<compile_context>
chip_gen: v7x
topology: tpu7x:2x2x1
jax: 0.10.0
libtpu: 0.0.40
codegen_flags: <defaults>
</compile_context>

<pallas_src>
import jax
import jax.numpy as jnp
import numpy as np
from jax import lax
from jax.experimental import pallas as pl
from jax.experimental.pallas import tpu as pltpu

EXPANSION = 4
BN_EPS = 1e-5


def _pick_tile_rows(H, W, stride, max_rows=8):
    """Largest row tile TH <= max_rows with H % TH == 0, TH % stride == 0 and
    8-divisible flattened tile row counts (sublane constraint).  Production
    code would size this from the per-generation VMEM budget instead."""
    feasible = [
        th for th in range(1, H + 1)
        if H % th == 0
        and th % stride == 0
        and (th * W) % 8 == 0
        and ((th // stride) * (W // stride)) % 8 == 0
    ]
    if not feasible:
        raise ValueError(f"no feasible row tile for H={H}, W={W}, stride={stride}")
    small = [th for th in feasible if th <= max_rows]
    return max(small) if small else min(feasible)


def _make_sel(TH, W, stride):
    """0/1 matrix selecting the strided output pixels from a flat (TH*W, C)
    full-resolution tile.  Shape ((TH//s)*(W//s), TH*W), bf16."""
    s = stride
    P = (TH // s) * (W // s)
    sel = np.zeros((P, TH * W), np.float32)
    for a in range(TH // s):
        for b in range(W // s):
            sel[a * (W // s) + b, (a * s) * W + b * s] = 1.0
    return jnp.asarray(sel, jnp.bfloat16)


def bottleneck_forward(x_nchw, params, *, stride, has_shortcut, tile_rows=None):
    N, Cin, H, W = x_nchw.shape
    Cmid = params["w1"].shape[1]
    Cout = params["w4"].shape[1]
    s = stride
    assert H % s == 0 and W % s == 0
    if s > 1:
        assert has_shortcut, "stride != 1 implies a projection shortcut"
    if not has_shortcut:
        assert Cin == Cout and s == 1

    TH = tile_rows if tile_rows is not None else _pick_tile_rows(H, W, s)
    Hp = H + 2                       # one padding/halo row top + bottom
    LH = (TH + 2) * W                # flat rows of a halo'd tile
    PC = TH * W                      # full-resolution centre rows of the tile
    PO = (TH // s) * (W // s)        # strided output rows of the tile
    n_tiles = H // TH
    fused = has_shortcut and s == 1  # fuse [shortcut | w1] into one matmul

    # ---- glue: layout + BN folding (eval-mode running statistics) ----------
    x = jnp.transpose(x_nchw, (0, 2, 3, 1)).astype(jnp.bfloat16)    # NHWC
    x = jnp.pad(x, ((0, 0), (1, 1), (0, 0), (0, 0)))                # pad H by 1
    x = x.reshape(N, Hp * W, Cin)

    w1f = (params["w1"] * params["s1"]).astype(jnp.bfloat16)
    w3f = (params["w3"] * params["s2"]).astype(jnp.bfloat16)
    w4f = (params["w4"] * params["s3"]).astype(jnp.bfloat16)
    if has_shortcut:
        wsf = (params["ws"] * params["ss"]).astype(jnp.bfloat16)

    inputs = [x]
    in_specs = [pl.BlockSpec((1, Hp * W, Cin), lambda n, t: (n, 0, 0))]

    def add_const(arr):
        nd = arr.ndim
        inputs.append(arr)
        in_specs.append(pl.BlockSpec(arr.shape, lambda n, t, _nd=nd: (0,) * _nd))

    # first matmul weight: [shortcut | w1] fused (stride 1), or w1 alone.
    add_const(jnp.concatenate([wsf, w1f], axis=1) if fused else w1f)
    add_const(params["b1"])
    add_const(params["wdw"])          # (9, Cmid) f32 depthwise taps
    add_const(w3f)
    add_const(params["b2"])
    add_const(w4f)
    add_const(params["b3"])
    if has_shortcut:
        add_const(params["bs"])
        if not fused:                 # stride > 1: shortcut on strided x
            add_const(wsf)
    if s > 1:
        add_const(_make_sel(TH, W, s))

    def kernel(*refs):
        it = iter(refs)
        x_ref = next(it)
        wf_ref = next(it)
        b1_ref = next(it)
        wdw_ref = next(it)
        w3_ref = next(it)
        b2_ref = next(it)
        w4_ref = next(it)
        b3_ref = next(it)
        bs_ref = next(it) if has_shortcut else None
        ws_ref = next(it) if (has_shortcut and not fused) else None
        sel_ref = next(it) if s > 1 else None
        o_ref = next(it)

        t = pl.program_id(1)
        base = pl.multiple_of(t * PC, 8)
        xh = x_ref[0, pl.ds(base, LH), :]                  # (LH, Cin) bf16

        # ---- 1x1 conv (+ fused projection shortcut) -> BN bias -> ReLU ----
        hh = jnp.dot(xh, wf_ref[...], preferred_element_type=jnp.float32)
        if fused:
            sc_full = hh[:, :Cout] + bs_ref[...]           # projection shortcut
            h = hh[:, Cout:]
        else:
            h = hh
        h = jnp.maximum(h + b1_ref[...], 0.0)              # (LH, Cmid) f32

        # zero halo rows that fall outside the image (only at t == 0 / last)
        q = lax.broadcasted_iota(jnp.int32, (LH, 1), 0)
        bad = jnp.logical_or(
            jnp.logical_and(t == 0, q < W),
            jnp.logical_and(t == n_tiles - 1, q >= (TH + 1) * W))
        h = jnp.where(bad, 0.0, h)

        # ---- depthwise 3x3, padding 1: rolls (XLU) + column masks ----------
        wdw = wdw_ref[...]                                  # (9, Cmid) f32
        col = q % W
        acc = h * wdw[4:5, :]                               # centre tap
        for di in (-1, 0, 1):
            for dj in (-1, 0, 1):
                if di == 0 and dj == 0:
                    continue
                k = di * W + dj                             # flat shift
                sh = pltpu.roll(h, shift=(-k) % LH, axis=0)
                if dj == 1:                                 # borders + wrap masked
                    sh = jnp.where(col < W - 1, sh, 0.0)
                elif dj == -1:
                    sh = jnp.where(col >= 1, sh, 0.0)
                acc = acc + sh * wdw[3 * (di + 1) + (dj + 1):
                                     3 * (di + 1) + (dj + 1) + 1, :]
        dwc = acc[W:W + PC]                                 # centre rows (PC, Cmid)

        # ---- stride: subsample BEFORE the expensive matmuls ----------------
        if s > 1:
            dw = jnp.dot(sel_ref[...], dwc.astype(jnp.bfloat16),
                         preferred_element_type=jnp.float32)        # (PO, Cmid)
        else:
            dw = dwc

        # ---- 1x1 conv -> BN bias -> ReLU, then expansion 1x1 conv -> BN ----
        h2 = jnp.dot(dw.astype(jnp.bfloat16), w3_ref[...],
                     preferred_element_type=jnp.float32)
        h2 = jnp.maximum(h2 + b2_ref[...], 0.0)
        h3 = jnp.dot(h2.astype(jnp.bfloat16), w4_ref[...],
                     preferred_element_type=jnp.float32) + b3_ref[...]

        # ---- shortcut -------------------------------------------------------
        if has_shortcut:
            if fused:
                sc = sc_full[W:W + PC]
            else:                                           # stride > 1
                xc = xh[W:W + PC]
                xsel = jnp.dot(sel_ref[...], xc,
                               preferred_element_type=jnp.float32)
                sc = jnp.dot(xsel.astype(jnp.bfloat16), ws_ref[...],
                             preferred_element_type=jnp.float32) + bs_ref[...]
        else:
            sc = xh[W:W + PC].astype(jnp.float32)           # identity

        o_ref[0] = jnp.maximum(h3 + sc, 0.0).astype(o_ref.dtype)

    # rough VMEM budget -> explicit limit (never below default 32 MiB,
    # capped at 48 MiB to stay safe on v7x's 64 MiB physical VMEM).
    est = 2 * Hp * W * Cin * 2 + 2 * PO * Cout * 4
    est += 2 * sum(int(np.prod(a.shape)) * a.dtype.itemsize for a in inputs[1:])
    est += 12 * LH * max(Cmid, Cout) * 4
    vmem_limit = int(min(max(2 * est, 32 * 1024 * 1024), 48 * 1024 * 1024))

    out_flat = pl.pallas_call(
        kernel,
        out_shape=jax.ShapeDtypeStruct((N, (H // s) * (W // s), Cout),
                                       jnp.float32),
        grid=(N, n_tiles),
        in_specs=in_specs,
        out_specs=pl.BlockSpec((1, PO, Cout), lambda n, t: (n, t, 0)),
        compiler_params=pltpu.CompilerParams(
            dimension_semantics=("parallel", "parallel"),
            vmem_limit_bytes=vmem_limit),
    )(*inputs)

    out = out_flat.reshape(N, H // s, W // s, Cout)
    return jnp.transpose(out, (0, 3, 1, 2))                 # back to NCHW


def init_params(key, in_channels, out_channels, stride):
    """Deterministic params; eval-mode BN folded to per-channel scale/bias."""
    cout = out_channels * EXPANSION
    has_shortcut = (stride != 1) or (in_channels != cout)
    keys = jax.random.split(key, 9)

    def w(k, shape, fan_in):
        return jax.random.normal(k, shape, jnp.float32) / np.sqrt(fan_in)

    def bn(k, c):
        k1, k2, k3, k4 = jax.random.split(k, 4)
        gamma = 1.0 + 0.1 * jax.random.normal(k1, (c,), jnp.float32)
        beta = 0.1 * jax.random.normal(k2, (c,), jnp.float32)
        mean = 0.1 * jax.random.normal(k3, (c,), jnp.float32)
        var = jnp.abs(jax.random.normal(k4, (c,), jnp.float32)) + 0.5
        scale = gamma / jnp.sqrt(var + BN_EPS)
        bias = beta - mean * scale
        return scale.reshape(1, c), bias.reshape(1, c)

    p = {}
    p["w1"] = w(keys[0], (in_channels, out_channels), in_channels)
    p["s1"], p["b1"] = bn(keys[1], out_channels)
    p["wdw"] = w(keys[2], (9, out_channels), 9)             # (ki*3+kj, c)
    p["w3"] = w(keys[3], (out_channels, out_channels), out_channels)
    p["s2"], p["b2"] = bn(keys[4], out_channels)
    p["w4"] = w(keys[5], (out_channels, cout), out_channels)
    p["s3"], p["b3"] = bn(keys[6], cout)
    if has_shortcut:
        p["ws"] = w(keys[7], (in_channels, cout), in_channels)
        p["ss"], p["bs"] = bn(keys[8], cout)
    return p, has_shortcut


def ref_forward(x_nchw, params, *, stride, has_shortcut):
    """Pure-JAX reference (lax.conv) mirroring the PyTorch module, f32."""
    dn = ("NHWC", "HWIO", "NHWC")
    prec = lax.Precision.HIGHEST
    x = jnp.transpose(x_nchw, (0, 2, 3, 1)).astype(jnp.float32)
    cmid = params["w1"].shape[1]

    def c1x1(h, wmat, s=1):
        return lax.conv_general_dilated(h, wmat[None, None], (s, s), "VALID",
                                        dimension_numbers=dn, precision=prec)

    h = c1x1(x, params["w1"])
    h = jnp.maximum(h * params["s1"][0] + params["b1"][0], 0.0)
    wdw = params["wdw"].reshape(3, 3, 1, cmid)
    h = lax.conv_general_dilated(h, wdw, (stride, stride), ((1, 1), (1, 1)),
                                 dimension_numbers=dn,
                                 feature_group_count=cmid, precision=prec)
    h = c1x1(h, params["w3"])
    h = jnp.maximum(h * params["s2"][0] + params["b2"][0], 0.0)
    h = c1x1(h, params["w4"])
    h = h * params["s3"][0] + params["b3"][0]
    if has_shortcut:
        sc = c1x1(x, params["ws"], stride)
        sc = sc * params["ss"][0] + params["bs"][0]
    else:
        sc = x
    out = jnp.maximum(h + sc, 0.0)
    return jnp.transpose(out, (0, 3, 1, 2))


if __name__ == "__main__":
    key = jax.random.PRNGKey(0)
    N, H, W = 2, 16, 16
    configs = [
        # (in_channels, out_channels, stride)
        (4, 4, 1),    # projection shortcut, stride 1 (fused w1|ws matmul)
        (4, 4, 2),    # projection shortcut, stride 2 (in-kernel stride)
        (16, 4, 1),   # identity shortcut (projection weights not passed)
    ]
    for i, (cin, cmid, stride) in enumerate(configs):
        kx, kp = jax.random.split(jax.random.fold_in(key, i))
        x = jax.random.normal(kx, (N, cin, H, W), jnp.float32)
        params, has_sc = init_params(kp, cin, cmid, stride)
        y = jax.block_until_ready(
            bottleneck_forward(x, params, stride=stride, has_shortcut=has_sc))
        y_ref = ref_forward(x, params, stride=stride, has_shortcut=has_sc)
        assert y.shape == (N, cmid * EXPANSION, H // stride, W // stride)
        np.testing.assert_allclose(np.asarray(y), np.asarray(y_ref),
                                   rtol=2e-2, atol=5e-2)
    print("KERNEL_OK")
</pallas_src>

<mosaic_0001>
module attributes {stable_mosaic.version = 11 : i64} {
  func.func @kernel(%arg0: i32, %arg1: i32, %arg2: memref<1x288x4xbf16, #tpu.memory_space<vmem>>, %arg3: memref<4x20xbf16, #tpu.memory_space<vmem>>, %arg4: memref<1x4xf32, #tpu.memory_space<vmem>>, %arg5: memref<9x4xf32, #tpu.memory_space<vmem>>, %arg6: memref<4x4xbf16, #tpu.memory_space<vmem>>, %arg7: memref<1x4xf32, #tpu.memory_space<vmem>>, %arg8: memref<4x16xbf16, #tpu.memory_space<vmem>>, %arg9: memref<1x16xf32, #tpu.memory_space<vmem>>, %arg10: memref<1x16xf32, #tpu.memory_space<vmem>>, %arg11: memref<1x128x16xf32, #tpu.memory_space<vmem>>) attributes {dimension_semantics = [#tpu.dimension_semantics<parallel>, #tpu.dimension_semantics<parallel>], iteration_bounds = array<i64: 2, 2>, scalar_prefetch = 0 : i64, scratch_operands = 0 : i64, tpu.core_type = #tpu.core_type<tc>, window_params = [{transform_indices = @transform_0, window_bounds = array<i64: 1, 288, 4>}, {pipeline_mode = #tpu.pipeline_mode<synchronous>, transform_indices = @transform_1, window_bounds = array<i64: 4, 20>}, {pipeline_mode = #tpu.pipeline_mode<synchronous>, transform_indices = @transform_2, window_bounds = array<i64: 1, 4>}, {pipeline_mode = #tpu.pipeline_mode<synchronous>, transform_indices = @transform_3, window_bounds = array<i64: 9, 4>}, {pipeline_mode = #tpu.pipeline_mode<synchronous>, transform_indices = @transform_4, window_bounds = array<i64: 4, 4>}, {pipeline_mode = #tpu.pipeline_mode<synchronous>, transform_indices = @transform_5, window_bounds = array<i64: 1, 4>}, {pipeline_mode = #tpu.pipeline_mode<synchronous>, transform_indices = @transform_6, window_bounds = array<i64: 4, 16>}, {pipeline_mode = #tpu.pipeline_mode<synchronous>, transform_indices = @transform_7, window_bounds = array<i64: 1, 16>}, {pipeline_mode = #tpu.pipeline_mode<synchronous>, transform_indices = @transform_8, window_bounds = array<i64: 1, 16>}, {transform_indices = @transform_9, window_bounds = array<i64: 1, 128, 16>}]} {
    %c128_i32 = arith.constant 128 : i32
    %0 = arith.muli %arg1, %c128_i32 : i32
    %1 = tpu.assume_multiple %0, 8 : i32
    %c0 = arith.constant 0 : index
    %2 = arith.index_cast %1 : i32 to index
    %c0_0 = arith.constant 0 : index
    %3 = vector.load %arg2[%c0, %2, %c0_0] : memref<1x288x4xbf16, #tpu.memory_space<vmem>>, vector<1x160x4xbf16>
    %4 = vector.shape_cast %3 : vector<1x160x4xbf16> to vector<160x4xbf16>
    %c0_1 = arith.constant 0 : index
    %c0_2 = arith.constant 0 : index
    %5 = vector.load %arg3[%c0_1, %c0_2] : memref<4x20xbf16, #tpu.memory_space<vmem>>, vector<4x20xbf16>
    %cst = arith.constant dense<0.000000e+00> : vector<160x20xf32>
    %6 = tpu.matmul %4, %5, %cst {dimension_numbers = #tpu.dot_dimension_numbers<[1], [0], [0], [1], [0, 0, 1, 1], [], []>} : vector<160x4xbf16>, vector<4x20xbf16>, vector<160x20xf32> -> vector<160x20xf32>
    %7 = vector.extract_strided_slice %6 {offsets = [0, 0], sizes = [160, 16], strides = [1, 1]} : vector<160x20xf32> to vector<160x16xf32>
    %c0_3 = arith.constant 0 : index
    %c0_4 = arith.constant 0 : index
    %8 = vector.load %arg10[%c0_3, %c0_4] : memref<1x16xf32, #tpu.memory_space<vmem>>, vector<1x16xf32>
    %9 = vector.broadcast %8 : vector<1x16xf32> to vector<160x16xf32>
    %10 = arith.addf %7, %9 : vector<160x16xf32>
    %11 = vector.extract_strided_slice %6 {offsets = [0, 16], sizes = [160, 4], strides = [1, 1]} : vector<160x20xf32> to vector<160x4xf32>
    %c0_5 = arith.constant 0 : index
    %c0_6 = arith.constant 0 : index
    %12 = vector.load %arg4[%c0_5, %c0_6] : memref<1x4xf32, #tpu.memory_space<vmem>>, vector<1x4xf32>
    %13 = vector.broadcast %12 : vector<1x4xf32> to vector<160x4xf32>
    %14 = arith.addf %11, %13 : vector<160x4xf32>
    %cst_7 = arith.constant 0.000000e+00 : f32
    %15 = vector.broadcast %cst_7 : f32 to vector<160x4xf32>
    %16 = arith.maximumf %14, %15 : vector<160x4xf32>
    %17 = tpu.iota {dimensions = array<i32: 0>} : vector<160x1xi32>
    %c0_i32 = arith.constant 0 : i32
    %18 = arith.cmpi eq, %arg1, %c0_i32 : i32
    %c16_i32 = arith.constant 16 : i32
    %19 = vector.broadcast %c16_i32 : i32 to vector<160x1xi32>
    %20 = arith.cmpi slt, %17, %19 : vector<160x1xi32>
    %21 = vector.broadcast %18 : i1 to vector<160x1xi1>
    %22 = arith.andi %21, %20 : vector<160x1xi1>
    %c1_i32 = arith.constant 1 : i32
    %23 = arith.cmpi eq, %arg1, %c1_i32 : i32
    %c144_i32 = arith.constant 144 : i32
    %24 = vector.broadcast %c144_i32 : i32 to vector<160x1xi32>
    %25 = arith.cmpi sge, %17, %24 : vector<160x1xi32>
    %26 = vector.broadcast %23 : i1 to vector<160x1xi1>
    %27 = arith.andi %26, %25 : vector<160x1xi1>
    %28 = arith.ori %22, %27 : vector<160x1xi1>
    %cst_8 = arith.constant 0.000000e+00 : f32
    %29 = vector.shape_cast %28 : vector<160x1xi1> to vector<160x1xi1>
    %30 = vector.broadcast %29 : vector<160x1xi1> to vector<160x4xi1>
    %31 = vector.broadcast %cst_8 : f32 to vector<160x4xf32>
    %32 = arith.select %30, %31, %16 : vector<160x4xi1>, vector<160x4xf32>
    %c0_9 = arith.constant 0 : index
    %c0_10 = arith.constant 0 : index
    %33 = vector.load %arg5[%c0_9, %c0_10] : memref<9x4xf32, #tpu.memory_space<vmem>>, vector<9x4xf32>
    %c16_i32_11 = arith.constant 16 : i32
    %c0_i32_12 = arith.constant 0 : i32
    %34 = arith.cmpi eq, %c16_i32_11, %c0_i32_12 : i32
    %c1_i32_13 = arith.constant 1 : i32
    %35 = arith.select %34, %c1_i32_13, %c16_i32_11 : i32
    %36 = vector.broadcast %35 : i32 to vector<160x1xi32>
    %37 = arith.remsi %17, %36 : vector<160x1xi32>
    %c0_i32_14 = arith.constant 0 : i32
    %38 = vector.broadcast %c0_i32_14 : i32 to vector<160x1xi32>
    %39 = arith.cmpi ne, %37, %38 : vector<160x1xi32>
    %c0_i32_15 = arith.constant 0 : i32
    %40 = vector.broadcast %c0_i32_15 : i32 to vector<160x1xi32>
    %41 = arith.cmpi slt, %37, %40 : vector<160x1xi32>
    %c0_i32_16 = arith.constant 0 : i32
    %42 = arith.cmpi slt, %35, %c0_i32_16 : i32
    %43 = vector.broadcast %42 : i1 to vector<160x1xi1>
    %44 = vector.broadcast %43 : vector<160x1xi1> to vector<160x1xi1>
    %45 = arith.xori %41, %44 : vector<160x1xi1>
    %46 = arith.andi %45, %39 : vector<160x1xi1>
    %47 = vector.broadcast %35 : i32 to vector<160x1xi32>
    %48 = arith.addi %37, %47 : vector<160x1xi32>
    %49 = arith.select %46, %48, %37 : vector<160x1xi1>, vector<160x1xi32>
    %50 = vector.extract_strided_slice %33 {offsets = [4, 0], sizes = [1, 4], strides = [1, 1]} : vector<9x4xf32> to vector<1x4xf32>
    %51 = vector.broadcast %50 : vector<1x4xf32> to vector<160x4xf32>
    %52 = arith.mulf %32, %51 : vector<160x4xf32>
    %c17_i32 = arith.constant 17 : i32
    %53 = tpu.dynamic_rotate %32 by %c17_i32 dim 0 : vector<160x4xf32>, i32 -> vector<160x4xf32>
    %c1_i32_17 = arith.constant 1 : i32
    %54 = vector.broadcast %c1_i32_17 : i32 to vector<160x1xi32>
    %55 = arith.cmpi sge, %49, %54 : vector<160x1xi32>
    %cst_18 = arith.constant 0.000000e+00 : f32
    %56 = vector.shape_cast %55 : vector<160x1xi1> to vector<160x1xi1>
    %57 = vector.broadcast %56 : vector<160x1xi1> to vector<160x4xi1>
    %58 = vector.broadcast %cst_18 : f32 to vector<160x4xf32>
    %59 = arith.select %57, %53, %58 : vector<160x4xi1>, vector<160x4xf32>
    %60 = vector.extract_strided_slice %33 {offsets = [0, 0], sizes = [1, 4], strides = [1, 1]} : vector<9x4xf32> to vector<1x4xf32>
    %61 = vector.broadcast %60 : vector<1x4xf32> to vector<160x4xf32>
    %62 = arith.mulf %59, %61 : vector<160x4xf32>
    %63 = arith.addf %52, %62 : vector<160x4xf32>
    %c16_i32_19 = arith.constant 16 : i32
    %64 = tpu.dynamic_rotate %32 by %c16_i32_19 dim 0 : vector<160x4xf32>, i32 -> vector<160x4xf32>
    %65 = vector.extract_strided_slice %33 {offsets = [1, 0], sizes = [1, 4], strides = [1, 1]} : vector<9x4xf32> to vector<1x4xf32>
    %66 = vector.broadcast %65 : vector<1x4xf32> to vector<160x4xf32>
    %67 = arith.mulf %64, %66 : vector<160x4xf32>
    %68 = arith.addf %63, %67 : vector<160x4xf32>
    %c15_i32 = arith.constant 15 : i32
    %69 = tpu.dynamic_rotate %32 by %c15_i32 dim 0 : vector<160x4xf32>, i32 -> vector<160x4xf32>
    %c15_i32_20 = arith.constant 15 : i32
    %70 = vector.broadcast %c15_i32_20 : i32 to vector<160x1xi32>
    %71 = arith.cmpi slt, %49, %70 : vector<160x1xi32>
    %cst_21 = arith.constant 0.000000e+00 : f32
    %72 = vector.shape_cast %71 : vector<160x1xi1> to vector<160x1xi1>
    %73 = vector.broadcast %72 : vector<160x1xi1> to vector<160x4xi1>
    %74 = vector.broadcast %cst_21 : f32 to vector<160x4xf32>
    %75 = arith.select %73, %69, %74 : vector<160x4xi1>, vector<160x4xf32>
    %76 = vector.extract_strided_slice %33 {offsets = [2, 0], sizes = [1, 4], strides = [1, 1]} : vector<9x4xf32> to vector<1x4xf32>
    %77 = vector.broadcast %76 : vector<1x4xf32> to vector<160x4xf32>
    %78 = arith.mulf %75, %77 : vector<160x4xf32>
    %79 = arith.addf %68, %78 : vector<160x4xf32>
    %c1_i32_22 = arith.constant 1 : i32
    %80 = tpu.dynamic_rotate %32 by %c1_i32_22 dim 0 : vector<160x4xf32>, i32 -> vector<160x4xf32>
    %c1_i32_23 = arith.constant 1 : i32
    %81 = vector.broadcast %c1_i32_23 : i32 to vector<160x1xi32>
    %82 = arith.cmpi sge, %49, %81 : vector<160x1xi32>
    %cst_24 = arith.constant 0.000000e+00 : f32
    %83 = vector.shape_cast %82 : vector<160x1xi1> to vector<160x1xi1>
    %84 = vector.broadcast %83 : vector<160x1xi1> to vector<160x4xi1>
    %85 = vector.broadcast %cst_24 : f32 to vector<160x4xf32>
    %86 = arith.select %84, %80, %85 : vector<160x4xi1>, vector<160x4xf32>
    %87 = vector.extract_strided_slice %33 {offsets = [3, 0], sizes = [1, 4], strides = [1, 1]} : vector<9x4xf32> to vector<1x4xf32>
    %88 = vector.broadcast %87 : vector<1x4xf32> to vector<160x4xf32>
    %89 = arith.mulf %86, %88 : vector<160x4xf32>
    %90 = arith.addf %79, %89 : vector<160x4xf32>
    %c159_i32 = arith.constant 159 : i32
    %91 = tpu.dynamic_rotate %32 by %c159_i32 dim 0 : vector<160x4xf32>, i32 -> vector<160x4xf32>
    %c15_i32_25 = arith.constant 15 : i32
    %92 = vector.broadcast %c15_i32_25 : i32 to vector<160x1xi32>
    %93 = arith.cmpi slt, %49, %92 : vector<160x1xi32>
    %cst_26 = arith.constant 0.000000e+00 : f32
    %94 = vector.shape_cast %93 : vector<160x1xi1> to vector<160x1xi1>
    %95 = vector.broadcast %94 : vector<160x1xi1> to vector<160x4xi1>
    %96 = vector.broadcast %cst_26 : f32 to vector<160x4xf32>
    %97 = arith.select %95, %91, %96 : vector<160x4xi1>, vector<160x4xf32>
    %98 = vector.extract_strided_slice %33 {offsets = [5, 0], sizes = [1, 4], strides = [1, 1]} : vector<9x4xf32> to vector<1x4xf32>
    %99 = vector.broadcast %98 : vector<1x4xf32> to vector<160x4xf32>
    %100 = arith.mulf %97, %99 : vector<160x4xf32>
    %101 = arith.addf %90, %100 : vector<160x4xf32>
    %c145_i32 = arith.constant 145 : i32
    %102 = tpu.dynamic_rotate %32 by %c145_i32 dim 0 : vector<160x4xf32>, i32 -> vector<160x4xf32>
    %c1_i32_27 = arith.constant 1 : i32
    %103 = vector.broadcast %c1_i32_27 : i32 to vector<160x1xi32>
    %104 = arith.cmpi sge, %49, %103 : vector<160x1xi32>
    %cst_28 = arith.constant 0.000000e+00 : f32
    %105 = vector.shape_cast %104 : vector<160x1xi1> to vector<160x1xi1>
    %106 = vector.broadcast %105 : vector<160x1xi1> to vector<160x4xi1>
    %107 = vector.broadcast %cst_28 : f32 to vector<160x4xf32>
    %108 = arith.select %106, %102, %107 : vector<160x4xi1>, vector<160x4xf32>
    %109 = vector.extract_strided_slice %33 {offsets = [6, 0], sizes = [1, 4], strides = [1, 1]} : vector<9x4xf32> to vector<1x4xf32>
    %110 = vector.broadcast %109 : vector<1x4xf32> to vector<160x4xf32>
    %111 = arith.mulf %108, %110 : vector<160x4xf32>
    %112 = arith.addf %101, %111 : vector<160x4xf32>
    %c144_i32_29 = arith.constant 144 : i32
    %113 = tpu.dynamic_rotate %32 by %c144_i32_29 dim 0 : vector<160x4xf32>, i32 -> vector<160x4xf32>
    %114 = vector.extract_strided_slice %33 {offsets = [7, 0], sizes = [1, 4], strides = [1, 1]} : vector<9x4xf32> to vector<1x4xf32>
    %115 = vector.broadcast %114 : vector<1x4xf32> to vector<160x4xf32>
    %116 = arith.mulf %113, %115 : vector<160x4xf32>
    %117 = arith.addf %112, %116 : vector<160x4xf32>
    %c143_i32 = arith.constant 143 : i32
    %118 = tpu.dynamic_rotate %32 by %c143_i32 dim 0 : vector<160x4xf32>, i32 -> vector<160x4xf32>
    %c15_i32_30 = arith.constant 15 : i32
    %119 = vector.broadcast %c15_i32_30 : i32 to vector<160x1xi32>
    %120 = arith.cmpi slt, %49, %119 : vector<160x1xi32>
    %cst_31 = arith.constant 0.000000e+00 : f32
    %121 = vector.shape_cast %120 : vector<160x1xi1> to vector<160x1xi1>
    %122 = vector.broadcast %121 : vector<160x1xi1> to vector<160x4xi1>
    %123 = vector.broadcast %cst_31 : f32 to vector<160x4xf32>
    %124 = arith.select %122, %118, %123 : vector<160x4xi1>, vector<160x4xf32>
    %125 = vector.extract_strided_slice %33 {offsets = [8, 0], sizes = [1, 4], strides = [1, 1]} : vector<9x4xf32> to vector<1x4xf32>
    %126 = vector.broadcast %125 : vector<1x4xf32> to vector<160x4xf32>
    %127 = arith.mulf %124, %126 : vector<160x4xf32>
    %128 = arith.addf %117, %127 : vector<160x4xf32>
    %129 = vector.extract_strided_slice %128 {offsets = [16, 0], sizes = [128, 4], strides = [1, 1]} : vector<160x4xf32> to vector<128x4xf32>
    %130 = arith.truncf %129 : vector<128x4xf32> to vector<128x4xbf16>
    %c0_32 = arith.constant 0 : index
    %c0_33 = arith.constant 0 : index
    %131 = vector.load %arg6[%c0_32, %c0_33] : memref<4x4xbf16, #tpu.memory_space<vmem>>, vector<4x4xbf16>
    %cst_34 = arith.constant dense<0.000000e+00> : vector<128x4xf32>
    %132 = tpu.matmul %130, %131, %cst_34 {dimension_numbers = #tpu.dot_dimension_numbers<[1], [0], [0], [1], [0, 0, 1, 1], [], []>} : vector<128x4xbf16>, vector<4x4xbf16>, vector<128x4xf32> -> vector<128x4xf32>
    %c0_35 = arith.constant 0 : index
    %c0_36 = arith.constant 0 : index
    %133 = vector.load %arg7[%c0_35, %c0_36] : memref<1x4xf32, #tpu.memory_space<vmem>>, vector<1x4xf32>
    %134 = vector.broadcast %133 : vector<1x4xf32> to vector<128x4xf32>
    %135 = arith.addf %132, %134 : vector<128x4xf32>
    %cst_37 = arith.constant 0.000000e+00 : f32
    %136 = vector.broadcast %cst_37 : f32 to vector<128x4xf32>
    %137 = arith.maximumf %135, %136 : vector<128x4xf32>
    %138 = arith.truncf %137 : vector<128x4xf32> to vector<128x4xbf16>
    %c0_38 = arith.constant 0 : index
    %c0_39 = arith.constant 0 : index
    %139 = vector.load %arg8[%c0_38, %c0_39] : memref<4x16xbf16, #tpu.memory_space<vmem>>, vector<4x16xbf16>
    %cst_40 = arith.constant dense<0.000000e+00> : vector<128x16xf32>
    %140 = tpu.matmul %138, %139, %cst_40 {dimension_numbers = #tpu.dot_dimension_numbers<[1], [0], [0], [1], [0, 0, 1, 1], [], []>} : vector<128x4xbf16>, vector<4x16xbf16>, vector<128x16xf32> -> vector<128x16xf32>
    %c0_41 = arith.constant 0 : index
    %c0_42 = arith.constant 0 : index
    %141 = vector.load %arg9[%c0_41, %c0_42] : memref<1x16xf32, #tpu.memory_space<vmem>>, vector<1x16xf32>
    %142 = vector.broadcast %141 : vector<1x16xf32> to vector<128x16xf32>
    %143 = arith.addf %140, %142 : vector<128x16xf32>
    %144 = vector.extract_strided_slice %10 {offsets = [16, 0], sizes = [128, 16], strides = [1, 1]} : vector<160x16xf32> to vector<128x16xf32>
    %145 = arith.addf %143, %144 : vector<128x16xf32>
    %cst_43 = arith.constant 0.000000e+00 : f32
    %146 = vector.broadcast %cst_43 : f32 to vector<128x16xf32>
    %147 = arith.maximumf %145, %146 : vector<128x16xf32>
    %c0_44 = arith.constant 0 : index
    %c0_45 = arith.constant 0 : index
    %c0_46 = arith.constant 0 : index
    %148 = vector.load %arg11[%c0_44, %c0_45, %c0_46] : memref<1x128x16xf32, #tpu.memory_space<vmem>>, vector<1x128x16xf32>
    %149 = vector.shape_cast %148 : vector<1x128x16xf32> to vector<128x16xf32>
    %150 = vector.shape_cast %147 : vector<128x16xf32> to vector<1x128x16xf32>
    tpu.vector_store %arg11[%c0_44, %c0_45, %c0_46], %150 {strides = array<i32>} : memref<1x128x16xf32, #tpu.memory_space<vmem>>, vector<1x128x16xf32>,
    return
  }
  func.func @transform_0(%arg0: i32, %arg1: i32) -> (i32, i32, i32) {
    %c0_i32 = arith.constant 0 : i32
    %c0_i32_0 = arith.constant 0 : i32
    %c0_i32_1 = arith.constant 0 : i32
    return %arg0, %c0_i32, %c0_i32_0 : i32, i32, i32
  }
  func.func @transform_1(%arg0: i32, %arg1: i32) -> (i32, i32) {
    %c0_i32 = arith.constant 0 : i32
    %c0_i32_0 = arith.constant 0 : i32
    %c0_i32_1 = arith.constant 0 : i32
    return %c0_i32, %c0_i32_0 : i32, i32
  }
  func.func @transform_2(%arg0: i32, %arg1: i32) -> (i32, i32) {
    %c0_i32 = arith.constant 0 : i32
    %c0_i32_0 = arith.constant 0 : i32
    %c0_i32_1 = arith.constant 0 : i32
    return %c0_i32, %c0_i32_0 : i32, i32
  }
  func.func @transform_3(%arg0: i32, %arg1: i32) -> (i32, i32) {
    %c0_i32 = arith.constant 0 : i32
    %c0_i32_0 = arith.constant 0 : i32
    %c0_i32_1 = arith.constant 0 : i32
    return %c0_i32, %c0_i32_0 : i32, i32
  }
  func.func @transform_4(%arg0: i32, %arg1: i32) -> (i32, i32) {
    %c0_i32 = arith.constant 0 : i32
    %c0_i32_0 = arith.constant 0 : i32
    %c0_i32_1 = arith.constant 0 : i32
    return %c0_i32, %c0_i32_0 : i32, i32
  }
  func.func @transform_5(%arg0: i32, %arg1: i32) -> (i32, i32) {
    %c0_i32 = arith.constant 0 : i32
    %c0_i32_0 = arith.constant 0 : i32
    %c0_i32_1 = arith.constant 0 : i32
    return %c0_i32, %c0_i32_0 : i32, i32
  }
  func.func @transform_6(%arg0: i32, %arg1: i32) -> (i32, i32) {
    %c0_i32 = arith.constant 0 : i32
    %c0_i32_0 = arith.constant 0 : i32
    %c0_i32_1 = arith.constant 0 : i32
    return %c0_i32, %c0_i32_0 : i32, i32
  }
  func.func @transform_7(%arg0: i32, %arg1: i32) -> (i32, i32) {
    %c0_i32 = arith.constant 0 : i32
    %c0_i32_0 = arith.constant 0 : i32
    %c0_i32_1 = arith.constant 0 : i32
    return %c0_i32, %c0_i32_0 : i32, i32
  }
  func.func @transform_8(%arg0: i32, %arg1: i32) -> (i32, i32) {
    %c0_i32 = arith.constant 0 : i32
    %c0_i32_0 = arith.constant 0 : i32
    %c0_i32_1 = arith.constant 0 : i32
    return %c0_i32, %c0_i32_0 : i32, i32
  }
  func.func @transform_9(%arg0: i32, %arg1: i32) -> (i32, i32, i32) {
    %c0_i32 = arith.constant 0 : i32
    %c0_i32_0 = arith.constant 0 : i32
    return %arg0, %arg1, %c0_i32 : i32, i32, i32
  }
}

</mosaic_0001>

<llo_original>
// kernel: tpu_custom_call.1
$region0: #{tpu_custom_call.1}
  #allocation0 [shape = 'u32[]', space=smem, size = 0x4, offset = 0x4, fixed_abs, tag = 'smem constant byte address 0x4 - core index']
  #allocation1 [shape = 'u32[144,128]{1,0:T(1,128)}', space=vmem, size = 0x12000, scoped, tag = 'internal scratch']
  %s0 = inlined_call_operand.vmem [shape: bf16[2,288,4], index: 0, kind: input, shape index: {}]
  %s1 = inlined_call_operand.vmem [shape: bf16[4,20], index: 1, kind: input, shape index: {}]
  %s2 = inlined_call_operand.vmem [shape: f32[1,4], index: 2, kind: input, shape index: {}]
  %s3 = inlined_call_operand.vmem [shape: f32[9,4], index: 3, kind: input, shape index: {}]
  %s4 = inlined_call_operand.vmem [shape: bf16[4,4], index: 4, kind: input, shape index: {}]
  %s5 = inlined_call_operand.vmem [shape: f32[1,4], index: 5, kind: input, shape index: {}]
  %s6 = inlined_call_operand.vmem [shape: bf16[4,16], index: 6, kind: input, shape index: {}]
  %s7 = inlined_call_operand.vmem [shape: f32[1,16], index: 7, kind: input, shape index: {}]
  %s8 = inlined_call_operand.vmem [shape: f32[1,16], index: 8, kind: input, shape index: {}]
  %s9 = inlined_call_operand.vmem [shape: f32[2,256,16], index: 9, kind: output, shape index: {}]
  %s10 = sld [smem:[#allocation0]]
  $region69: #{tpu_custom_call.1} parent=0
    _
  %s12 = ssub.s32 1, %s10
  %s13 = scalar_select 0, %s12, %s10
  loop: start=0, step=1, limit=6
  $region2: #{tpu_custom_call.1} parent=0 // loop_pre_header
    _
  $region3: #{tpu_custom_call.1} parent=0 // loop_header
    %s15 = sphi 0, %s19
    %p16 = scmp.ge.s32.totalorder %s15, 6
    %s22 = sphi 0, %s34
    %s23 = sphi 0, %s30
    %s24 = sphi 0, %s22
    %s25 = sphi 0, %s23
    %s26 = sphi 0, %s24
    %s27 = sphi 0, %s25
    %s37 = sphi 0, %s39
    %s40 = sphi 0, %s37
    %s41 = sphi 0, %s40
    %s57 = sphi 0, %s41
    %s61 = sphi 0, %s61
    %s63 = sphi 0, %s61
    %s64 = sphi 0, %s63
    %s78 = sphi 0, %s64
    %s82 = sphi 0, %s82
    %s84 = sphi 0, %s82
    %s85 = sphi 0, %s84
    %s99 = sphi 0, %s85
    %s103 = sphi 0, %s103
    %s105 = sphi 0, %s103
    %s106 = sphi 0, %s105
    %s120 = sphi 0, %s106
    %s124 = sphi 0, %s124
    %s126 = sphi 0, %s124
    %s127 = sphi 0, %s126
    %s141 = sphi 0, %s127
    %s145 = sphi 0, %s145
    %s147 = sphi 0, %s145
    %s148 = sphi 0, %s147
    %s162 = sphi 0, %s148
    %s166 = sphi 0, %s166
    %s168 = sphi 0, %s166
    %s169 = sphi 0, %s168
    %s183 = sphi 0, %s169
    %s187 = sphi 0, %s187
    %s189 = sphi 0, %s187
    %s190 = sphi 0, %s189
    %s204 = sphi 0, %s190
    %s208 = sphi 0, %s208
    %s210 = sphi 0, %s208
    %s211 = sphi 0, %s210
    %s225 = sphi 0, %s211
    %s233 = sphi 0, %s235
    %s236 = sphi 0, %s233
    %s237 = sphi 0, %s236
    %s253 = sphi 0, %s237
  $region4: #{tpu_custom_call.1} parent=0 // loop_header_branch
    %18 = sbr.rel (%p16) target = $region8
  $region5: #{tpu_custom_call.1} parent=0 // loop_body
    %s20 = ssub.s32 %s15, 1
    %s21 = ssub.s32 %s15, 2
    %s28 = sadd.s32 1, %s23
    %p29 = scmp.ge.s32.totalorder %s28, 2
    %s30 = scalar_select %p29, 0, %s28
    %s31 = sadd.s32 1, %s22
    %s32 = scalar_select %p29, %s31, %s22
    %p33 = scmp.ge.s32.totalorder %s32, 2
    %s34 = scalar_select %p33, 0, %s32
    %s35 = ssub.s32 %s22, %s34
    %p36 = scmp.eq.s32.totalorder %s35, 0
    %s38 = sadd.s32 %s37, 1
    %s39 = scalar_select %p36, %s37, %s38
    %p42 = pneg %p36
    %p43 = scmp.eq.s32.totalorder %s15, 3
    %p44 = por %p42, %p43
    %p45 = scmp.ne.s32.totalorder %s37, %s40
    %p46 = scmp.eq.s32.totalorder %s15, 0
    %p47 = por %p45, %p46
    %p48 = scmp.ne.s32.totalorder %s37, %s40
    %p49 = scmp.eq.s32.totalorder %s20, 3
    %p50 = por %p48, %p49
    %p51 = scmp.ne.s32.totalorder %s40, %s41
    %p52 = scmp.eq.s32.totalorder %s20, 0
    %p53 = por %p51, %p52
    %p54 = scmp.ne.s32.totalorder %s40, %s41
    %p55 = scmp.eq.s32.totalorder %s21, 3
    %p56 = por %p54, %p55
    %p58 = scmp.ne.s32.totalorder %s41, %s57
    %p59 = scmp.eq.s32.totalorder %s21, 0
    %p60 = por %p58, %p59
    %s62 = sadd.s32 %s61, 1
    %p65 = scmp.eq.s32.totalorder %s15, 3
    %p66 = scmp.ne.s32.totalorder %s61, %s63
    %p67 = scmp.eq.s32.totalorder %s15, 0
    %p68 = por %p66, %p67
    %p69 = scmp.ne.s32.totalorder %s61, %s63
    %p70 = scmp.eq.s32.totalorder %s20, 3
    %p71 = por %p69, %p70
    %p72 = scmp.ne.s32.totalorder %s63, %s64
    %p73 = scmp.eq.s32.totalorder %s20, 0
    %p74 = por %p72, %p73
    %p75 = scmp.ne.s32.totalorder %s63, %s64
    %p76 = scmp.eq.s32.totalorder %s21, 3
    %p77 = por %p75, %p76
    %p79 = scmp.ne.s32.totalorder %s64, %s78
    %p80 = scmp.eq.s32.totalorder %s21, 0
    %p81 = por %p79, %p80
    %s83 = sadd.s32 %s82, 1
    %p86 = scmp.eq.s32.totalorder %s15, 3
    %p87 = scmp.ne.s32.totalorder %s82, %s84
    %p88 = scmp.eq.s32.totalorder %s15, 0
    %p89 = por %p87, %p88
    %p90 = scmp.ne.s32.totalorder %s82, %s84
    %p91 = scmp.eq.s32.totalorder %s20, 3
    %p92 = por %p90, %p91
    %p93 = scmp.ne.s32.totalorder %s84, %s85
    %p94 = scmp.eq.s32.totalorder %s20, 0
    %p95 = por %p93, %p94
    %p96 = scmp.ne.s32.totalorder %s84, %s85
    %p97 = scmp.eq.s32.totalorder %s21, 3
    %p98 = por %p96, %p97
    %p100 = scmp.ne.s32.totalorder %s85, %s99
    %p101 = scmp.eq.s32.totalorder %s21, 0
    %p102 = por %p100, %p101
    %s104 = sadd.s32 %s103, 1
    %p107 = scmp.eq.s32.totalorder %s15, 3
    %p108 = scmp.ne.s32.totalorder %s103, %s105
    %p109 = scmp.eq.s32.totalorder %s15, 0
    %p110 = por %p108, %p109
    %p111 = scmp.ne.s32.totalorder %s103, %s105
    %p112 = scmp.eq.s32.totalorder %s20, 3
    %p113 = por %p111, %p112
    %p114 = scmp.ne.s32.totalorder %s105, %s106
    %p115 = scmp.eq.s32.totalorder %s20, 0
    %p116 = por %p114, %p115
    %p117 = scmp.ne.s32.totalorder %s105, %s106
    %p118 = scmp.eq.s32.totalorder %s21, 3
    %p119 = por %p117, %p118
    %p121 = scmp.ne.s32.totalorder %s106, %s120
    %p122 = scmp.eq.s32.totalorder %s21, 0
    %p123 = por %p121, %p122
    %s125 = sadd.s32 %s124, 1
    %p128 = scmp.eq.s32.totalorder %s15, 3
    %p129 = scmp.ne.s32.totalorder %s124, %s126
    %p130 = scmp.eq.s32.totalorder %s15, 0
    %p131 = por %p129, %p130
    %p132 = scmp.ne.s32.totalorder %s124, %s126
    %p133 = scmp.eq.s32.totalorder %s20, 3
    %p134 = por %p132, %p133
    %p135 = scmp.ne.s32.totalorder %s126, %s127
    %p136 = scmp.eq.s32.totalorder %s20, 0
    %p137 = por %p135, %p136
    %p138 = scmp.ne.s32.totalorder %s126, %s127
    %p139 = scmp.eq.s32.totalorder %s21, 3
    %p140 = por %p138, %p139
    %p142 = scmp.ne.s32.totalorder %s127, %s141
    %p143 = scmp.eq.s32.totalorder %s21, 0
    %p144 = por %p142, %p143
    %s146 = sadd.s32 %s145, 1
    %p149 = scmp.eq.s32.totalorder %s15, 3
    %p150 = scmp.ne.s32.totalorder %s145, %s147
    %p151 = scmp.eq.s32.totalorder %s15, 0
    %p152 = por %p150, %p151
    %p153 = scmp.ne.s32.totalorder %s145, %s147
    %p154 = scmp.eq.s32.totalorder %s20, 3
    %p155 = por %p153, %p154
    %p156 = scmp.ne.s32.totalorder %s147, %s148
    %p157 = scmp.eq.s32.totalorder %s20, 0
    %p158 = por %p156, %p157
    %p159 = scmp.ne.s32.totalorder %s147, %s148
    %p160 = scmp.eq.s32.totalorder %s21, 3
    %p161 = por %p159, %p160
    %p163 = scmp.ne.s32.totalorder %s148, %s162
    %p164 = scmp.eq.s32.totalorder %s21, 0
    %p165 = por %p163, %p164
    %s167 = sadd.s32 %s166, 1
    %p170 = scmp.eq.s32.totalorder %s15, 3
    %p171 = scmp.ne.s32.totalorder %s166, %s168
    %p172 = scmp.eq.s32.totalorder %s15, 0
    %p173 = por %p171, %p172
    %p174 = scmp.ne.s32.totalorder %s166, %s168
    %p175 = scmp.eq.s32.totalorder %s20, 3
    %p176 = por %p174, %p175
    %p177 = scmp.ne.s32.totalorder %s168, %s169
    %p178 = scmp.eq.s32.totalorder %s20, 0
    %p179 = por %p177, %p178
    %p180 = scmp.ne.s32.totalorder %s168, %s169
    %p181 = scmp.eq.s32.totalorder %s21, 3
    %p182 = por %p180, %p181
    %p184 = scmp.ne.s32.totalorder %s169, %s183
    %p185 = scmp.eq.s32.totalorder %s21, 0
    %p186 = por %p184, %p185
    %s188 = sadd.s32 %s187, 1
    %p191 = scmp.eq.s32.totalorder %s15, 3
    %p192 = scmp.ne.s32.totalorder %s187, %s189
    %p193 = scmp.eq.s32.totalorder %s15, 0
    %p194 = por %p192, %p193
    %p195 = scmp.ne.s32.totalorder %s187, %s189
    %p196 = scmp.eq.s32.totalorder %s20, 3
    %p197 = por %p195, %p196
    %p198 = scmp.ne.s32.totalorder %s189, %s190
    %p199 = scmp.eq.s32.totalorder %s20, 0
    %p200 = por %p198, %p199
    %p201 = scmp.ne.s32.totalorder %s189, %s190
    %p202 = scmp.eq.s32.totalorder %s21, 3
    %p203 = por %p201, %p202
    %p205 = scmp.ne.s32.totalorder %s190, %s204
    %p206 = scmp.eq.s32.totalorder %s21, 0
    %p207 = por %p205, %p206
    %s209 = sadd.s32 %s208, 1
    %p212 = scmp.eq.s32.totalorder %s15, 3
    %p213 = scmp.ne.s32.totalorder %s208, %s210
    %p214 = scmp.eq.s32.totalorder %s15, 0
    %p215 = por %p213, %p214
    %p216 = scmp.ne.s32.totalorder %s208, %s210
    %p217 = scmp.eq.s32.totalorder %s20, 3
    %p218 = por %p216, %p217
    %p219 = scmp.ne.s32.totalorder %s210, %s211
    %p220 = scmp.eq.s32.totalorder %s20, 0
    %p221 = por %p219, %p220
    %p222 = scmp.ne.s32.totalorder %s210, %s211
    %p223 = scmp.eq.s32.totalorder %s21, 3
    %p224 = por %p222, %p223
    %p226 = scmp.ne.s32.totalorder %s211, %s225
    %p227 = scmp.eq.s32.totalorder %s21, 0
    %p228 = por %p226, %p227
    %s229 = ssub.s32 %s22, %s34
    %s230 = ssub.s32 %s23, %s30
    %s231 = sor.u32 %s229, %s230
    %p232 = scmp.eq.s32.totalorder %s231, 0
    %s234 = sadd.s32 %s233, 1
    %s235 = scalar_select %p232, %s233, %s234
    %p238 = pneg %p232
    %p239 = scmp.eq.s32.totalorder %s15, 3
    %p240 = por %p238, %p239
    %p241 = scmp.ne.s32.totalorder %s233, %s236
    %p242 = scmp.eq.s32.totalorder %s15, 0
    %p243 = por %p241, %p242
    %p244 = scmp.ne.s32.totalorder %s233, %s236
    %p245 = scmp.eq.s32.totalorder %s20, 3
    %p246 = por %p244, %p245
    %p247 = scmp.ne.s32.totalorder %s236, %s237
    %p248 = scmp.eq.s32.totalorder %s20, 0
    %p249 = por %p247, %p248
    %p250 = scmp.ne.s32.totalorder %s236, %s237
    %p251 = scmp.eq.s32.totalorder %s21, 3
    %p252 = por %p250, %p251
    %p254 = scmp.ne.s32.totalorder %s237, %s253
    %p255 = scmp.eq.s32.totalorder %s21, 0
    %p256 = por %p254, %p255
    %p257 = scmp.le.s32.totalorder 1, %s15
    %p258 = scmp.lt.s32.totalorder %s15, 5
    %p259 = pnand %p257, %p258
    %p260 = pneg %p259
    // Predicated region
    $region9: #{tpu_custom_call.1} parent=5 // pred_check
      _
    $region10: #{tpu_custom_call.1} parent=5 // pred_check_branch
      %262 = sbr.rel (%p259) target = $region12
    $region11: #{tpu_custom_call.1} parent=5 // pred_region
      %s263 = ssub.s32 %s15, 1
      // Predicated region
      $region13: #{tpu_custom_call.1} parent=11 // pred_check
        %p264 = pneg %p74
      $region14: #{tpu_custom_call.1} parent=11 // pred_check_branch
        %266 = sbr.rel (%p264) target = $region16
      $region15: #{tpu_custom_call.1} parent=11 // pred_region
        _
      $region16: #{tpu_custom_call.1} parent=11 // pred_fallthru
        _
      // Predicated region
      $region17: #{tpu_custom_call.1} parent=11 // pred_check
        %p267 = pneg %p95
      $region18: #{tpu_custom_call.1} parent=11 // pred_check_branch
        %269 = sbr.rel (%p267) target = $region20
      $region19: #{tpu_custom_call.1} parent=11 // pred_region
        _
      $region20: #{tpu_custom_call.1} parent=11 // pred_fallthru
        _
      // Predicated region
      $region21: #{tpu_custom_call.1} parent=11 // pred_check
        %p270 = pneg %p116
      $region22: #{tpu_custom_call.1} parent=11 // pred_check_branch
        %272 = sbr.rel (%p270) target = $region24
      $region23: #{tpu_custom_call.1} parent=11 // pred_region
        _
      $region24: #{tpu_custom_call.1} parent=11 // pred_fallthru
        _
      // Predicated region
      $region25: #{tpu_custom_call.1} parent=11 // pred_check
        %p273 = pneg %p137
      $region26: #{tpu_custom_call.1} parent=11 // pred_check_branch
        %275 = sbr.rel (%p273) target = $region28
      $region27: #{tpu_custom_call.1} parent=11 // pred_region
        _
      $region28: #{tpu_custom_call.1} parent=11 // pred_fallthru
        _
      // Predicated region
      $region29: #{tpu_custom_call.1} parent=11 // pred_check
        %p276 = pneg %p158
      $region30: #{tpu_custom_call.1} parent=11 // pred_check_branch
        %278 = sbr.rel (%p276) target = $region32
      $region31: #{tpu_custom_call.1} parent=11 // pred_region
        _
      $region32: #{tpu_custom_call.1} parent=11 // pred_fallthru
        _
      // Predicated region
      $region33: #{tpu_custom_call.1} parent=11 // pred_check
        %p279 = pneg %p179
      $region34: #{tpu_custom_call.1} parent=11 // pred_check_branch
        %281 = sbr.rel (%p279) target = $region36
      $region35: #{tpu_custom_call.1} parent=11 // pred_region
        _
      $region36: #{tpu_custom_call.1} parent=11 // pred_fallthru
        _
      // Predicated region
      $region37: #{tpu_custom_call.1} parent=11 // pred_check
        %p282 = pneg %p200
      $region38: #{tpu_custom_call.1} parent=11 // pred_check_branch
        %284 = sbr.rel (%p282) target = $region40
      $region39: #{tpu_custom_call.1} parent=11 // pred_region
        _
      $region40: #{tpu_custom_call.1} parent=11 // pred_fallthru
        _
      // Predicated region
      $region41: #{tpu_custom_call.1} parent=11 // pred_check
        %p285 = pneg %p221
      $region42: #{tpu_custom_call.1} parent=11 // pred_check_branch
        %287 = sbr.rel (%p285) target = $region44
      $region43: #{tpu_custom_call.1} parent=11 // pred_region
        _
      $region44: #{tpu_custom_call.1} parent=11 // pred_fallthru
        _
    $region12: #{tpu_custom_call.1} parent=5 // pred_fallthru
      _
    %p288 = scmp.lt.s32.totalorder %s15, 4
    // Predicated region
    $region45: #{tpu_custom_call.1} parent=5 // pred_check
      %p289 = pneg %p288
    $region46: #{tpu_custom_call.1} parent=5 // pred_check_branch
      %291 = sbr.rel (%p289) target = $region48
    $region47: #{tpu_custom_call.1} parent=5 // pred_region
      // Predicated region
      $region49: #{tpu_custom_call.1} parent=47 // pred_check
        %p292 = pneg %p47
      $region50: #{tpu_custom_call.1} parent=47 // pred_check_branch
        %294 = sbr.rel (%p292) target = $region52
      $region51: #{tpu_custom_call.1} parent=47 // pred_region
        %p295 = scmp.lt.s32.totalorder %s22, 1
        %s296 = scalar_select %p295, %s22, 1
        %s297 = smul.addr %s296, 36
        %s298 = smul.addr %s297, 4
        %s299 = scalar_lea.vmem %s0, %s298
      $region52: #{tpu_custom_call.1} parent=47 // pred_fallthru
        _
    $region48: #{tpu_custom_call.1} parent=5 // pred_fallthru
      _
    %p300 = scmp.le.s32.totalorder 1, %s15
    %p301 = scmp.lt.s32.totalorder %s15, 5
    %p302 = pnand %p300, %p301
    %p303 = pneg %p302
    // Predicated region
    $region53: #{tpu_custom_call.1} parent=5 // pred_check
      _
    $region54: #{tpu_custom_call.1} parent=5 // pred_check_branch
      %305 = sbr.rel (%p302) target = $region56
    $region55: #{tpu_custom_call.1} parent=5 // pred_region
      %s306 = ssub.s32 %s15, 1
      %p307 = scmp.lt.s32.totalorder %s24, 1
      %s308 = scalar_select %p307, %s24, 1
      %s309 = smul.addr %s308, 36
      %s310 = smul.addr %s309, 4
      %s311 = scalar_lea.vmem %s0, %s310
      %p312 = pneg %p53
      %p313 = pneg %p50
      %p314 = pneg %p74
      %p315 = pneg %p71
      %p316 = pneg %p95
      %p317 = pneg %p92
      %p318 = pneg %p116
      %p319 = pneg %p113
      %p320 = pneg %p137
      %p321 = pneg %p134
      %p322 = pneg %p158
      %p323 = pneg %p155
      %p324 = pneg %p179
      %p325 = pneg %p176
      %p326 = pneg %p200
      %p327 = pneg %p197
      %p328 = pneg %p221
      %p329 = pneg %p218
      %p330 = pneg %p249
      %p331 = pneg %p246
      %s332 = smul.u32 16, %s25
      %p333 = scmp.lt.s32.totalorder %s24, 1
      %s334 = scalar_select %p333, %s24, 1
      %p335 = scmp.lt.s32.totalorder %s332, 31
      %s336 = scalar_select %p335, %s332, 31
      %s337 = smul.addr %s334, 32
      %s338 = sadd.s32 %s336, %s337
      %s339 = smul.addr %s338, 8
      %s340 = scalar_lea.vmem %s9, %s339
      %p341 = scmp.lt.s32.totalorder %s24, 1
      %s342 = scalar_select %p341, %s24, 1
      %s343 = smul.addr %s342, 36
      %s344 = smul.addr %s343, 4
      %s345 = scalar_lea.vmem %s0, %s344
      %s346 = smul.u32 16, %s25
      %p347 = scmp.lt.s32.totalorder %s24, 1
      %s348 = scalar_select %p347, %s24, 1
      %p349 = scmp.lt.s32.totalorder %s346, 31
      %s350 = scalar_select %p349, %s346, 31
      %s351 = smul.addr %s348, 32
      %s352 = sadd.s32 %s350, %s351
      %s353 = smul.addr %s352, 8
      %s354 = scalar_lea.vmem %s9, %s353
      %s355 = smul.u32 16, %s25
      %s357 = smul.u32 %s25, 128
      %s358 = sshra.s32 %s357, 3
      %s359 = sand.u32 %s357, 7
      %s360 = smul.addr %s358, 4
      %s361 = scalar_lea.vmem %s345, %s360
      %v362 = vld [vmem:[%s361] sm:$0xf]
      %v363 = vld [vmem:[%s361 + $0x4] sm:$0xf]
      %v364 = vld [vmem:[%s361 + $0x8] sm:$0xf]
      %v365 = vld [vmem:[%s361 + $0xc] sm:$0xf]
      %v366 = vld [vmem:[%s361 + $0x10] sm:$0xf]
      %v367 = vld [vmem:[%s361 + $0x14] sm:$0xf]
      %v368 = vld [vmem:[%s361 + $0x18] sm:$0xf]
      %v369 = vld [vmem:[%s361 + $0x1c] sm:$0xf]
      %v370 = vld [vmem:[%s361 + $0x20] sm:$0xf]
      %v371 = vld [vmem:[%s361 + $0x24] sm:$0xf]
      %v372 = vld [vmem:[%s361 + $0x28] sm:$0xf]
      %v373 = vld [vmem:[%s361 + $0x2c] sm:$0xf]
      %v374 = vld [vmem:[%s361 + $0x30] sm:$0xf]
      %v375 = vld [vmem:[%s361 + $0x34] sm:$0xf]
      %v376 = vld [vmem:[%s361 + $0x38] sm:$0xf]
      %v377 = vld [vmem:[%s361 + $0x3c] sm:$0xf]
      %v378 = vld [vmem:[%s361 + $0x40] sm:$0xf]
      %v379 = vld [vmem:[%s361 + $0x44] sm:$0xf]
      %v380 = vld [vmem:[%s361 + $0x48] sm:$0xf]
      %v381 = vld [vmem:[%s361 + $0x4c] sm:$0xf]
      %v382 = vld [vmem:[%s1] sm:$0x3]
      %v403 = vunpack.c.l.b16 %v362
      %v404 = vunpack.c.l.b16 %v363
      %v405 = vunpack.c.l.b16 %v364
      %v406 = vunpack.c.l.b16 %v365
      %v407 = vunpack.c.l.b16 %v366
      %v408 = vunpack.c.l.b16 %v367
      %v409 = vunpack.c.l.b16 %v368
      %v410 = vunpack.c.l.b16 %v369
      %v411 = vunpack.c.l.b16 %v370
      %v412 = vunpack.c.l.b16 %v371
      %v413 = vunpack.c.l.b16 %v372
      %v414 = vunpack.c.l.b16 %v373
      %v415 = vunpack.c.l.b16 %v374
      %v416 = vunpack.c.l.b16 %v375
      %v417 = vunpack.c.l.b16 %v376
      %v418 = vunpack.c.l.b16 %v377
      %v419 = vunpack.c.l.b16 %v378
      %v420 = vunpack.c.l.b16 %v379
      %v421 = vunpack.c.l.b16 %v380
      %v422 = vunpack.c.l.b16 %v381
      %v423 = vpack.c.b16 %v404, %v403
      %v424 = vpack.c.b16 %v406, %v405
      %v425 = vpack.c.b16 %v408, %v407
      %v426 = vpack.c.b16 %v410, %v409
      %v427 = vpack.c.b16 %v412, %v411
      %v428 = vpack.c.b16 %v414, %v413
      %v429 = vpack.c.b16 %v416, %v415
      %v430 = vpack.c.b16 %v418, %v417
      %v431 = vpack.c.b16 %v420, %v419
      %v432 = vpack.c.b16 %v422, %v421
      %vm433 = vcmask 31744
      %v435 = vsel %vm433, %v423, 0
      %v438 = vsel %vm433, %v424, 0
      %v441 = vsel %vm433, %v425, 0
      %v444 = vsel %vm433, %v426, 0
      %v447 = vsel %vm433, %v427, 0
      %v450 = vsel %vm433, %v428, 0
      %v453 = vsel %vm433, %v429, 0
      %v456 = vsel %vm433, %v430, 0
      %v459 = vsel %vm433, %v431, 0
      %v462 = vsel %vm433, %v432, 0
      %vm464 = vcmask 1041408
      %v466 = vsel %vm464, %v382, 0
      %468 = vmatprep.subr.bf16.mxu0 0
      %469 = vmatpush1.bf16.msra.mxu0 %v466
      %470 = vmatprep.subr.bf16.mxu0 0
      %471 = vmatpush1.bf16.msra.mxu0 0
      %472 = vmatprep.subr.bf16.mxu0 0
      %473 = vmatpush1.bf16.msra.mxu0 0
      %474 = vmatprep.subr.bf16.mxu0 0
      %475 = vmatpush1.bf16.msra.mxu0 0
      %476 = vmatprep.subr.bf16.mxu0 0
      %477 = vmatpush1.bf16.msra.mxu0 0
      %478 = vmatprep.subr.bf16.mxu0 0
      %479 = vmatpush1.bf16.msra.mxu0 0
      %480 = vmatprep.subr.bf16.mxu0 0
      %481 = vmatpush1.bf16.msra.mxu0 0
      %482 = vmatprep.subr.bf16.mxu0 0
      %483 = vmatpush1.bf16.msra.mxu0 0
      %484 = vmatprep.subr.bf16.mxu0 0
      %485 = vmatpush1.bf16.msra.mxu0 0
      %486 = vmatprep.subr.bf16.mxu0 0
      %487 = vmatpush1.bf16.msra.mxu0 0
      %488 = vmatprep.subr.bf16.mxu0 0
      %489 = vmatpush1.bf16.msra.mxu0 0
      %490 = vmatprep.subr.bf16.mxu0 0
      %491 = vmatpush1.bf16.msra.mxu0 0
      %492 = vmatprep.subr.bf16.mxu0 0
      %493 = vmatpush1.bf16.msra.mxu0 0
      %494 = vmatprep.subr.bf16.mxu0 0
      %495 = vmatpush1.bf16.msra.mxu0 0
      %496 = vmatprep.subr.bf16.mxu0 0
      %497 = vmatpush1.bf16.msra.mxu0 0
      %498 = vmatprep.subr.bf16.mxu0 0
      %499 = vmatpush1.bf16.msra.mxu0 0
      %500 = vmatprep.mubr.bf16.mxu0 0
      %501 = vmatmul.mubr.bf16.gmra.mrb[0].mxu0 %v435
      %v502 = vpop.f32.mrb[0].mxu0
      %v503 = vadd.f32 0.0, %v502
      %v504 = vpop.f32.mrb[0].mxu0
      %v505 = vpop.f32.mrb[0].mxu0
      %v506 = vadd.f32 0.0, %v505
      %v507 = vpop.f32.mrb[0].mxu0
      %508 = vmatprep.mubr.bf16.mxu0 0
      %509 = vmatmul.mubr.bf16.gmra.mrb[0].mxu0 %v438
      %v510 = vpop.f32.mrb[0].mxu0
      %v511 = vadd.f32 0.0, %v510
      %v512 = vpop.f32.mrb[0].mxu0
      %v513 = vpop.f32.mrb[0].mxu0
      %v514 = vadd.f32 0.0, %v513
      %v515 = vpop.f32.mrb[0].mxu0
      %516 = vmatprep.mubr.bf16.mxu0 0
      %517 = vmatmul.mubr.bf16.gmra.mrb[0].mxu0 %v441
      %v518 = vpop.f32.mrb[0].mxu0
      %v519 = vadd.f32 0.0, %v518
      %v520 = vpop.f32.mrb[0].mxu0
      %v521 = vpop.f32.mrb[0].mxu0
      %v522 = vadd.f32 0.0, %v521
      %v523 = vpop.f32.mrb[0].mxu0
      %524 = vmatprep.mubr.bf16.mxu0 0
      %525 = vmatmul.mubr.bf16.gmra.mrb[0].mxu0 %v444
      %v526 = vpop.f32.mrb[0].mxu0
      %v527 = vadd.f32 0.0, %v526
      %v528 = vpop.f32.mrb[0].mxu0
      %v529 = vpop.f32.mrb[0].mxu0
      %v530 = vadd.f32 0.0, %v529
      %v531 = vpop.f32.mrb[0].mxu0
      %532 = vmatprep.mubr.bf16.mxu0 0
      %533 = vmatmul.mubr.bf16.gmra.mrb[0].mxu0 %v447
      %v534 = vpop.f32.mrb[0].mxu0
      %v535 = vadd.f32 0.0, %v534
      %v536 = vpop.f32.mrb[0].mxu0
      %v537 = vpop.f32.mrb[0].mxu0
      %v538 = vadd.f32 0.0, %v537
      %v539 = vpop.f32.mrb[0].mxu0
      %540 = vmatprep.mubr.bf16.mxu0 0
      %541 = vmatmul.mubr.bf16.gmra.mrb[0].mxu0 %v450
      %v542 = vpop.f32.mrb[0].mxu0
      %v543 = vadd.f32 0.0, %v542
      %v544 = vpop.f32.mrb[0].mxu0
      %v545 = vpop.f32.mrb[0].mxu0
      %v546 = vadd.f32 0.0, %v545
      %v547 = vpop.f32.mrb[0].mxu0
      %548 = vmatprep.mubr.bf16.mxu0 0
      %549 = vmatmul.mubr.bf16.gmra.mrb[0].mxu0 %v453
      %v550 = vpop.f32.mrb[0].mxu0
      %v551 = vadd.f32 0.0, %v550
      %v552 = vpop.f32.mrb[0].mxu0
      %v553 = vpop.f32.mrb[0].mxu0
      %v554 = vadd.f32 0.0, %v553
      %v555 = vpop.f32.mrb[0].mxu0
      %556 = vmatprep.mubr.bf16.mxu0 0
      %557 = vmatmul.mubr.bf16.gmra.mrb[0].mxu0 %v456
      %v558 = vpop.f32.mrb[0].mxu0
      %v559 = vadd.f32 0.0, %v558
      %v560 = vpop.f32.mrb[0].mxu0
      %v561 = vpop.f32.mrb[0].mxu0
      %v562 = vadd.f32 0.0, %v561
      %v563 = vpop.f32.mrb[0].mxu0
      %564 = vmatprep.mubr.bf16.mxu0 0
      %565 = vmatmul.mubr.bf16.gmra.mrb[0].mxu0 %v459
      %v566 = vpop.f32.mrb[0].mxu0
      %v567 = vadd.f32 0.0, %v566
      %v568 = vpop.f32.mrb[0].mxu0
      %v569 = vpop.f32.mrb[0].mxu0
      %v570 = vadd.f32 0.0, %v569
      %v571 = vpop.f32.mrb[0].mxu0
      %572 = vmatprep.mubr.bf16.mxu0 0
      %573 = vmatmul.mubr.bf16.gmra.mrb[0].mxu0 %v462
      %v574 = vpop.f32.mrb[0].mxu0
      %v575 = vadd.f32 0.0, %v574
      %v576 = vpop.f32.mrb[0].mxu0
      %v577 = vpop.f32.mrb[0].mxu0
      %v578 = vadd.f32 0.0, %v577
      %v579 = vpop.f32.mrb[0].mxu0
      %580 = vdwg.mxu0
      %v581 = vld [vmem:[%s8] sm:$0x1]
      %v583 = vlaneseq
      %v584 = vshrl.u32 %v583, 7
      %v585 = vsub.s32 0, %v584
      %v586 = vrot.slane %v581, %v585
      %v588 = vadd.f32 %v511, %v586
      %v589 = vadd.f32 %v514, %v586
      %v590 = vadd.f32 %v519, %v586
      %v591 = vadd.f32 %v522, %v586
      %v592 = vadd.f32 %v527, %v586
      %v593 = vadd.f32 %v530, %v586
      %v594 = vadd.f32 %v535, %v586
      %v595 = vadd.f32 %v538, %v586
      %v596 = vadd.f32 %v543, %v586
      %v597 = vadd.f32 %v546, %v586
      %v598 = vadd.f32 %v551, %v586
      %v599 = vadd.f32 %v554, %v586
      %v600 = vadd.f32 %v559, %v586
      %v601 = vadd.f32 %v562, %v586
      %v602 = vadd.f32 %v567, %v586
      %v603 = vadd.f32 %v570, %v586
      %v604 = vld [vmem:[%s2] sm:$0x1]
      %v606 = vlaneseq
      %v607 = vshrl.u32 %v606, 7
      %v608 = vsub.s32 0, %v607
      %v609 = vrot.slane %v604, %v608
      %610 = vrot.lane.b32.xlu0 %v609, 16
      %v611 = vpop.permute.xlu0 %610
      %v613 = vadd.f32 %v503, %v611
      %v614 = vadd.f32 %v506, %v611
      %v615 = vadd.f32 %v511, %v611
      %v616 = vadd.f32 %v514, %v611
      %v617 = vadd.f32 %v519, %v611
      %v618 = vadd.f32 %v522, %v611
      %v619 = vadd.f32 %v527, %v611
      %v620 = vadd.f32 %v530, %v611
      %v621 = vadd.f32 %v535, %v611
      %v622 = vadd.f32 %v538, %v611
      %v623 = vadd.f32 %v543, %v611
      %v624 = vadd.f32 %v546, %v611
      %v625 = vadd.f32 %v551, %v611
      %v626 = vadd.f32 %v554, %v611
      %v627 = vadd.f32 %v559, %v611
      %v628 = vadd.f32 %v562, %v611
      %v629 = vadd.f32 %v567, %v611
      %v630 = vadd.f32 %v570, %v611
      %v631 = vadd.f32 %v575, %v611
      %v632 = vadd.f32 %v578, %v611
      %v633 = vmax.f32 %v613, 0.0
      %v634 = vmax.f32 %v614, 0.0
      %v635 = vmax.f32 %v615, 0.0
      %v636 = vmax.f32 %v616, 0.0
      %v637 = vmax.f32 %v617, 0.0
      %v638 = vmax.f32 %v618, 0.0
      %v639 = vmax.f32 %v619, 0.0
      %v640 = vmax.f32 %v620, 0.0
      %v641 = vmax.f32 %v621, 0.0
      %v642 = vmax.f32 %v622, 0.0
      %v643 = vmax.f32 %v623, 0.0
      %v644 = vmax.f32 %v624, 0.0
      %v645 = vmax.f32 %v625, 0.0
      %v646 = vmax.f32 %v626, 0.0
      %v647 = vmax.f32 %v627, 0.0
      %v648 = vmax.f32 %v628, 0.0
      %v649 = vmax.f32 %v629, 0.0
      %v650 = vmax.f32 %v630, 0.0
      %v651 = vmax.f32 %v631, 0.0
      %v652 = vmax.f32 %v632, 0.0
      %v653 = vlaneseq
      %v654 = vshrl.u32 %v653, 7
      %v655 = vadd.s32 %v654, 8
      %v656 = vadd.s32 %v654, 16
      %v657 = vadd.s32 %v654, 24
      %v658 = vadd.s32 %v654, 32
      %v659 = vadd.s32 %v654, 40
      %v660 = vadd.s32 %v654, 48
      %v661 = vadd.s32 %v654, 56
      %v662 = vadd.s32 %v654, 64
      %v663 = vadd.s32 %v654, 72
      %v664 = vadd.s32 %v654, 80
      %v665 = vadd.s32 %v654, 88
      %v666 = vadd.s32 %v654, 96
      %v667 = vadd.s32 %v654, 104
      %v668 = vadd.s32 %v654, 112
      %v669 = vadd.s32 %v654, 120
      %v670 = vadd.s32 %v654, 128
      %v671 = vadd.s32 %v654, 136
      %v672 = vadd.s32 %v654, 144
      %v673 = vadd.s32 %v654, 152
      %p674 = scmp.eq.s32.totalorder %s25, 0
      %vm675 = vcmp.lt.s32.totalorder %v654, 16
      %vm676 = vcmp.lt.s32.totalorder %v655, 16
      %vm677 = vcmp.lt.s32.totalorder %v656, 16
      %vm678 = vcmp.lt.s32.totalorder %v657, 16
      %vm679 = vcmp.lt.s32.totalorder %v658, 16
      %vm680 = vcmp.lt.s32.totalorder %v659, 16
      %vm681 = vcmp.lt.s32.totalorder %v660, 16
      %vm682 = vcmp.lt.s32.totalorder %v661, 16
      %vm683 = vcmp.lt.s32.totalorder %v662, 16
      %vm684 = vcmp.lt.s32.totalorder %v663, 16
      %vm685 = vcmp.lt.s32.totalorder %v664, 16
      %vm686 = vcmp.lt.s32.totalorder %v665, 16
      %vm687 = vcmp.lt.s32.totalorder %v666, 16
      %vm688 = vcmp.lt.s32.totalorder %v667, 16
      %vm689 = vcmp.lt.s32.totalorder %v668, 16
      %vm690 = vcmp.lt.s32.totalorder %v669, 16
      %vm691 = vcmp.lt.s32.totalorder %v670, 16
      %vm692 = vcmp.lt.s32.totalorder %v671, 16
      %vm693 = vcmp.lt.s32.totalorder %v672, 16
      %vm694 = vcmp.lt.s32.totalorder %v673, 16
      %s695 = scalar_select %p674, 1, 0
      %v696 = vstv %s695
      %vm697 = vcmp.eq.s32.totalorder %v696, 1
      %vm698 = vmand %vm697, %vm675
      %vm699 = vmand %vm697, %vm676
      %vm700 = vmand %vm697, %vm677
      %vm701 = vmand %vm697, %vm678
      %vm702 = vmand %vm697, %vm679
      %vm703 = vmand %vm697, %vm680
      %vm704 = vmand %vm697, %vm681
      %vm705 = vmand %vm697, %vm682
      %vm706 = vmand %vm697, %vm683
      %vm707 = vmand %vm697, %vm684
      %vm708 = vmand %vm697, %vm685
      %vm709 = vmand %vm697, %vm686
      %vm710 = vmand %vm697, %vm687
      %vm711 = vmand %vm697, %vm688
      %vm712 = vmand %vm697, %vm689
      %vm713 = vmand %vm697, %vm690
      %vm714 = vmand %vm697, %vm691
      %vm715 = vmand %vm697, %vm692
      %vm716 = vmand %vm697, %vm693
      %vm717 = vmand %vm697, %vm694
      %p718 = scmp.eq.s32.totalorder %s25, 1
      %vm719 = vcmp.ge.s32.totalorder %v654, 144
      %vm720 = vcmp.ge.s32.totalorder %v655, 144
      %vm721 = vcmp.ge.s32.totalorder %v656, 144
      %vm722 = vcmp.ge.s32.totalorder %v657, 144
      %vm723 = vcmp.ge.s32.totalorder %v658, 144
      %vm724 = vcmp.ge.s32.totalorder %v659, 144
      %vm725 = vcmp.ge.s32.totalorder %v660, 144
      %vm726 = vcmp.ge.s32.totalorder %v661, 144
      %vm727 = vcmp.ge.s32.totalorder %v662, 144
      %vm728 = vcmp.ge.s32.totalorder %v663, 144
      %vm729 = vcmp.ge.s32.totalorder %v664, 144
      %vm730 = vcmp.ge.s32.totalorder %v665, 144
      %vm731 = vcmp.ge.s32.totalorder %v666, 144
      %vm732 = vcmp.ge.s32.totalorder %v667, 144
      %vm733 = vcmp.ge.s32.totalorder %v668, 144
      %vm734 = vcmp.ge.s32.totalorder %v669, 144
      %vm735 = vcmp.ge.s32.totalorder %v670, 144
      %vm736 = vcmp.ge.s32.totalorder %v671, 144
      %vm737 = vcmp.ge.s32.totalorder %v672, 144
      %vm738 = vcmp.ge.s32.totalorder %v673, 144
      %s739 = scalar_select %p718, 1, 0
      %v740 = vstv %s739
      %vm741 = vcmp.eq.s32.totalorder %v740, 1
      %vm742 = vmand %vm741, %vm719
      %vm743 = vmand %vm741, %vm720
      %vm744 = vmand %vm741, %vm721
      %vm745 = vmand %vm741, %vm722
      %vm746 = vmand %vm741, %vm723
      %vm747 = vmand %vm741, %vm724
      %vm748 = vmand %vm741, %vm725
      %vm749 = vmand %vm741, %vm726
      %vm750 = vmand %vm741, %vm727
      %vm751 = vmand %vm741, %vm728
      %vm752 = vmand %vm741, %vm729
      %vm753 = vmand %vm741, %vm730
      %vm754 = vmand %vm741, %vm731
      %vm755 = vmand %vm741, %vm732
      %vm756 = vmand %vm741, %vm733
      %vm757 = vmand %vm741, %vm734
      %vm758 = vmand %vm741, %vm735
      %vm759 = vmand %vm741, %vm736
      %vm760 = vmand %vm741, %vm737
      %vm761 = vmand %vm741, %vm738
      %vm762 = vmor %vm698, %vm742
      %vm763 = vmor %vm699, %vm743
      %vm764 = vmor %vm700, %vm744
      %vm765 = vmor %vm701, %vm745
      %vm766 = vmor %vm702, %vm746
      %vm767 = vmor %vm703, %vm747
      %vm768 = vmor %vm704, %vm748
      %vm769 = vmor %vm705, %vm749
      %vm770 = vmor %vm706, %vm750
      %vm771 = vmor %vm707, %vm751
      %vm772 = vmor %vm708, %vm752
      %vm773 = vmor %vm709, %vm753
      %vm774 = vmor %vm710, %vm754
      %vm775 = vmor %vm711, %vm755
      %vm776 = vmor %vm712, %vm756
      %vm777 = vmor %vm713, %vm757
      %vm778 = vmor %vm714, %vm758
      %vm779 = vmor %vm715, %vm759
      %vm780 = vmor %vm716, %vm760
      %vm781 = vmor %vm717, %vm761
      %v782 = vsel %vm762, 1, 0
      %v783 = vsel %vm763, 1, 0
      %v784 = vsel %vm764, 1, 0
      %v785 = vsel %vm765, 1, 0
      %v786 = vsel %vm766, 1, 0
      %v787 = vsel %vm767, 1, 0
      %v788 = vsel %vm768, 1, 0
      %v789 = vsel %vm769, 1, 0
      %v790 = vsel %vm770, 1, 0
      %v791 = vsel %vm771, 1, 0
      %v792 = vsel %vm772, 1, 0
      %v793 = vsel %vm773, 1, 0
      %v794 = vsel %vm774, 1, 0
      %v795 = vsel %vm775, 1, 0
      %v796 = vsel %vm776, 1, 0
      %v797 = vsel %vm777, 1, 0
      %v798 = vsel %vm778, 1, 0
      %v799 = vsel %vm779, 1, 0
      %v800 = vsel %vm780, 1, 0
      %v801 = vsel %vm781, 1, 0
      %vm802 = vcmp.eq.s32.totalorder %v782, 1
      %vm803 = vcmp.eq.s32.totalorder %v783, 1
      %vm804 = vcmp.eq.s32.totalorder %v784, 1
      %vm805 = vcmp.eq.s32.totalorder %v785, 1
      %vm806 = vcmp.eq.s32.totalorder %v786, 1
      %vm807 = vcmp.eq.s32.totalorder %v787, 1
      %vm808 = vcmp.eq.s32.totalorder %v788, 1
      %vm809 = vcmp.eq.s32.totalorder %v789, 1
      %vm810 = vcmp.eq.s32.totalorder %v790, 1
      %vm811 = vcmp.eq.s32.totalorder %v791, 1
      %vm812 = vcmp.eq.s32.totalorder %v792, 1
      %vm813 = vcmp.eq.s32.totalorder %v793, 1
      %vm814 = vcmp.eq.s32.totalorder %v794, 1
      %vm815 = vcmp.eq.s32.totalorder %v795, 1
      %vm816 = vcmp.eq.s32.totalorder %v796, 1
      %vm817 = vcmp.eq.s32.totalorder %v797, 1
      %vm818 = vcmp.eq.s32.totalorder %v798, 1
      %vm819 = vcmp.eq.s32.totalorder %v799, 1
      %vm820 = vcmp.eq.s32.totalorder %v800, 1
      %vm821 = vcmp.eq.s32.totalorder %v801, 1
      %v822 = vsel %vm802, 0.0, %v633
      %v823 = vsel %vm803, 0.0, %v634
      %v824 = vsel %vm804, 0.0, %v635
      %v825 = vsel %vm805, 0.0, %v636
      %v826 = vsel %vm806, 0.0, %v637
      %v827 = vsel %vm807, 0.0, %v638
      %v828 = vsel %vm808, 0.0, %v639
      %v829 = vsel %vm809, 0.0, %v640
      %v830 = vsel %vm810, 0.0, %v641
      %v831 = vsel %vm811, 0.0, %v642
      %v832 = vsel %vm812, 0.0, %v643
      %v833 = vsel %vm813, 0.0, %v644
      %v834 = vsel %vm814, 0.0, %v645
      %v835 = vsel %vm815, 0.0, %v646
      %v836 = vsel %vm816, 0.0, %v647
      %v837 = vsel %vm817, 0.0, %v648
      %v838 = vsel %vm818, 0.0, %v649
      %v839 = vsel %vm819, 0.0, %v650
      %v840 = vsel %vm820, 0.0, %v651
      %v841 = vsel %vm821, 0.0, %v652
      %v842 = vld [vmem:[%s3] sm:$0xff]
      %v843 = vld [vmem:[%s3 + $0x8] sm:$0x1]
      %vm844 = vcmp.lt.s32.totalorder %v656, 0
      %v845 = vsub.s32 0, %v656
      %v846 = vsel %vm844, %v845, %v656
      %v847 = vshrl.u32 %v846, 4
      %v848 = vand.u32 %v846, 15
      %v849 = vsub.s32 0, %v848
      %v850 = vsel %vm844, %v849, %v848
      %vm851 = vcmp.lt.s32.totalorder %v657, 0
      %v852 = vsub.s32 0, %v657
      %v853 = vsel %vm851, %v852, %v657
      %v854 = vshrl.u32 %v853, 4
      %v855 = vand.u32 %v853, 15
      %v856 = vsub.s32 0, %v855
      %v857 = vsel %vm851, %v856, %v855
      %vm858 = vcmp.lt.s32.totalorder %v658, 0
      %v859 = vsub.s32 0, %v658
      %v860 = vsel %vm858, %v859, %v658
      %v861 = vshrl.u32 %v860, 4
      %v862 = vand.u32 %v860, 15
      %v863 = vsub.s32 0, %v862
      %v864 = vsel %vm858, %v863, %v862
      %vm865 = vcmp.lt.s32.totalorder %v659, 0
      %v866 = vsub.s32 0, %v659
      %v867 = vsel %vm865, %v866, %v659
      %v868 = vshrl.u32 %v867, 4
      %v869 = vand.u32 %v867, 15
      %v870 = vsub.s32 0, %v869
      %v871 = vsel %vm865, %v870, %v869
      %vm872 = vcmp.lt.s32.totalorder %v660, 0
      %v873 = vsub.s32 0, %v660
      %v874 = vsel %vm872, %v873, %v660
      %v875 = vshrl.u32 %v874, 4
      %v876 = vand.u32 %v874, 15
      %v877 = vsub.s32 0, %v876
      %v878 = vsel %vm872, %v877, %v876
      %vm879 = vcmp.lt.s32.totalorder %v661, 0
      %v880 = vsub.s32 0, %v661
      %v881 = vsel %vm879, %v880, %v661
      %v882 = vshrl.u32 %v881, 4
      %v883 = vand.u32 %v881, 15
      %v884 = vsub.s32 0, %v883
      %v885 = vsel %vm879, %v884, %v883
      %vm886 = vcmp.lt.s32.totalorder %v662, 0
      %v887 = vsub.s32 0, %v662
      %v888 = vsel %vm886, %v887, %v662
      %v889 = vshrl.u32 %v888, 4
      %v890 = vand.u32 %v888, 15
      %v891 = vsub.s32 0, %v890
      %v892 = vsel %vm886, %v891, %v890
      %vm893 = vcmp.lt.s32.totalorder %v663, 0
      %v894 = vsub.s32 0, %v663
      %v895 = vsel %vm893, %v894, %v663
      %v896 = vshrl.u32 %v895, 4
      %v897 = vand.u32 %v895, 15
      %v898 = vsub.s32 0, %v897
      %v899 = vsel %vm893, %v898, %v897
      %vm900 = vcmp.lt.s32.totalorder %v664, 0
      %v901 = vsub.s32 0, %v664
      %v902 = vsel %vm900, %v901, %v664
      %v903 = vshrl.u32 %v902, 4
      %v904 = vand.u32 %v902, 15
      %v905 = vsub.s32 0, %v904
      %v906 = vsel %vm900, %v905, %v904
      %vm907 = vcmp.lt.s32.totalorder %v665, 0
      %v908 = vsub.s32 0, %v665
      %v909 = vsel %vm907, %v908, %v665
      %v910 = vshrl.u32 %v909, 4
      %v911 = vand.u32 %v909, 15
      %v912 = vsub.s32 0, %v911
      %v913 = vsel %vm907, %v912, %v911
      %vm914 = vcmp.lt.s32.totalorder %v666, 0
      %v915 = vsub.s32 0, %v666
      %v916 = vsel %vm914, %v915, %v666
      %v917 = vshrl.u32 %v916, 4
      %v918 = vand.u32 %v916, 15
      %v919 = vsub.s32 0, %v918
      %v920 = vsel %vm914, %v919, %v918
      %vm921 = vcmp.lt.s32.totalorder %v667, 0
      %v922 = vsub.s32 0, %v667
      %v923 = vsel %vm921, %v922, %v667
      %v924 = vshrl.u32 %v923, 4
      %v925 = vand.u32 %v923, 15
      %v926 = vsub.s32 0, %v925
      %v927 = vsel %vm921, %v926, %v925
      %vm928 = vcmp.lt.s32.totalorder %v668, 0
      %v929 = vsub.s32 0, %v668
      %v930 = vsel %vm928, %v929, %v668
      %v931 = vshrl.u32 %v930, 4
      %v932 = vand.u32 %v930, 15
      %v933 = vsub.s32 0, %v932
      %v934 = vsel %vm928, %v933, %v932
      %vm935 = vcmp.lt.s32.totalorder %v669, 0
      %v936 = vsub.s32 0, %v669
      %v937 = vsel %vm935, %v936, %v669
      %v938 = vshrl.u32 %v937, 4
      %v939 = vand.u32 %v937, 15
      %v940 = vsub.s32 0, %v939
      %v941 = vsel %vm935, %v940, %v939
      %vm942 = vcmp.lt.s32.totalorder %v670, 0
      %v943 = vsub.s32 0, %v670
      %v944 = vsel %vm942, %v943, %v670
      %v945 = vshrl.u32 %v944, 4
      %v946 = vand.u32 %v944, 15
      %v947 = vsub.s32 0, %v946
      %v948 = vsel %vm942, %v947, %v946
      %vm949 = vcmp.lt.s32.totalorder %v671, 0
      %v950 = vsub.s32 0, %v671
      %v951 = vsel %vm949, %v950, %v671
      %v952 = vshrl.u32 %v951, 4
      %v953 = vand.u32 %v951, 15
      %v954 = vsub.s32 0, %v953
      %v955 = vsel %vm949, %v954, %v953
      %vm956 = vcmp.ne.s32.totalorder %v850, 0
      %vm957 = vcmp.ne.s32.totalorder %v857, 0
      %vm958 = vcmp.ne.s32.totalorder %v864, 0
      %vm959 = vcmp.ne.s32.totalorder %v871, 0
      %vm960 = vcmp.ne.s32.totalorder %v878, 0
      %vm961 = vcmp.ne.s32.totalorder %v885, 0
      %vm962 = vcmp.ne.s32.totalorder %v892, 0
      %vm963 = vcmp.ne.s32.totalorder %v899, 0
      %vm964 = vcmp.ne.s32.totalorder %v906, 0
      %vm965 = vcmp.ne.s32.totalorder %v913, 0
      %vm966 = vcmp.ne.s32.totalorder %v920, 0
      %vm967 = vcmp.ne.s32.totalorder %v927, 0
      %vm968 = vcmp.ne.s32.totalorder %v934, 0
      %vm969 = vcmp.ne.s32.totalorder %v941, 0
      %vm970 = vcmp.ne.s32.totalorder %v948, 0
      %vm971 = vcmp.ne.s32.totalorder %v955, 0
      %vm972 = vcmp.lt.s32.totalorder %v850, 0
      %vm973 = vcmp.lt.s32.totalorder %v857, 0
      %vm974 = vcmp.lt.s32.totalorder %v864, 0
      %vm975 = vcmp.lt.s32.totalorder %v871, 0
      %vm976 = vcmp.lt.s32.totalorder %v878, 0
      %vm977 = vcmp.lt.s32.totalorder %v885, 0
      %vm978 = vcmp.lt.s32.totalorder %v892, 0
      %vm979 = vcmp.lt.s32.totalorder %v899, 0
      %vm980 = vcmp.lt.s32.totalorder %v906, 0
      %vm981 = vcmp.lt.s32.totalorder %v913, 0
      %vm982 = vcmp.lt.s32.totalorder %v920, 0
      %vm983 = vcmp.lt.s32.totalorder %v927, 0
      %vm984 = vcmp.lt.s32.totalorder %v934, 0
      %vm985 = vcmp.lt.s32.totalorder %v941, 0
      %vm986 = vcmp.lt.s32.totalorder %v948, 0
      %vm987 = vcmp.lt.s32.totalorder %v955, 0
      %vm988 = vmand %vm972, %vm956
      %vm989 = vmand %vm973, %vm957
      %vm990 = vmand %vm974, %vm958
      %vm991 = vmand %vm975, %vm959
      %vm992 = vmand %vm976, %vm960
      %vm993 = vmand %vm977, %vm961
      %vm994 = vmand %vm978, %vm962
      %vm995 = vmand %vm979, %vm963
      %vm996 = vmand %vm980, %vm964
      %vm997 = vmand %vm981, %vm965
      %vm998 = vmand %vm982, %vm966
      %vm999 = vmand %vm983, %vm967
      %vm1000 = vmand %vm984, %vm968
      %vm1001 = vmand %vm985, %vm969
      %vm1002 = vmand %vm986, %vm970
      %vm1003 = vmand %vm987, %vm971
      %v1004 = vadd.s32 %v850, 16
      %v1005 = vadd.s32 %v857, 16
      %v1006 = vadd.s32 %v864, 16
      %v1007 = vadd.s32 %v871, 16
      %v1008 = vadd.s32 %v878, 16
      %v1009 = vadd.s32 %v885, 16
      %v1010 = vadd.s32 %v892, 16
      %v1011 = vadd.s32 %v899, 16
      %v1012 = vadd.s32 %v906, 16
      %v1013 = vadd.s32 %v913, 16
      %v1014 = vadd.s32 %v920, 16
      %v1015 = vadd.s32 %v927, 16
      %v1016 = vadd.s32 %v934, 16
      %v1017 = vadd.s32 %v941, 16
      %v1018 = vadd.s32 %v948, 16
      %v1019 = vadd.s32 %v955, 16
      %v1020 = vsel %vm988, %v1004, %v850
      %v1021 = vsel %vm989, %v1005, %v857
      %v1022 = vsel %vm990, %v1006, %v864
      %v1023 = vsel %vm991, %v1007, %v871
      %v1024 = vsel %vm992, %v1008, %v878
      %v1025 = vsel %vm993, %v1009, %v885
      %v1026 = vsel %vm994, %v1010, %v892
      %v1027 = vsel %vm995, %v1011, %v899
      %v1028 = vsel %vm996, %v1012, %v906
      %v1029 = vsel %vm997, %v1013, %v913
      %v1030 = vsel %vm998, %v1014, %v920
      %v1031 = vsel %vm999, %v1015, %v927
      %v1032 = vsel %vm1000, %v1016, %v934
      %v1033 = vsel %vm1001, %v1017, %v941
      %v1034 = vsel %vm1002, %v1018, %v948
      %v1035 = vsel %vm1003, %v1019, %v955
      %v1036 = vlaneseq
      %v1037 = vshrl.u32 %v1036, 7
      %v1038 = vsub.s32 4, %v1037
      %v1039 = vrot.slane %v842, %v1038
      %1041 = vrot.lane.b32.xlu0 %v1039, 16
      %v1042 = vpop.permute.xlu0 %1041
      %v1044 = vmul.f32 %v824, %v1042
      %v1045 = vmul.f32 %v825, %v1042
      %v1046 = vmul.f32 %v826, %v1042
      %v1047 = vmul.f32 %v827, %v1042
      %v1048 = vmul.f32 %v828, %v1042
      %v1049 = vmul.f32 %v829, %v1042
      %v1050 = vmul.f32 %v830, %v1042
      %v1051 = vmul.f32 %v831, %v1042
      %v1052 = vmul.f32 %v832, %v1042
      %v1053 = vmul.f32 %v833, %v1042
      %v1054 = vmul.f32 %v834, %v1042
      %v1055 = vmul.f32 %v835, %v1042
      %v1056 = vmul.f32 %v836, %v1042
      %v1057 = vmul.f32 %v837, %v1042
      %v1058 = vmul.f32 %v838, %v1042
      %v1059 = vmul.f32 %v839, %v1042
      %1077 = vrot.lane.b32.xlu0 %v822, 112
      %v1078 = vpop.permute.xlu0 %1077
      %1079 = vrot.lane.b32.xlu0 %v823, 112
      %v1080 = vpop.permute.xlu0 %1079
      %1081 = vrot.lane.b32.xlu0 %v824, 112
      %v1082 = vpop.permute.xlu0 %1081
      %1083 = vrot.lane.b32.xlu0 %v825, 112
      %v1084 = vpop.permute.xlu0 %1083
      %1085 = vrot.lane.b32.xlu0 %v826, 112
      %v1086 = vpop.permute.xlu0 %1085
      %1087 = vrot.lane.b32.xlu0 %v827, 112
      %v1088 = vpop.permute.xlu0 %1087
      %1089 = vrot.lane.b32.xlu0 %v828, 112
      %v1090 = vpop.permute.xlu0 %1089
      %1091 = vrot.lane.b32.xlu0 %v829, 112
      %v1092 = vpop.permute.xlu0 %1091
      %1093 = vrot.lane.b32.xlu0 %v830, 112
      %v1094 = vpop.permute.xlu0 %1093
      %1095 = vrot.lane.b32.xlu0 %v831, 112
      %v1096 = vpop.permute.xlu0 %1095
      %1097 = vrot.lane.b32.xlu0 %v832, 112
      %v1098 = vpop.permute.xlu0 %1097
      %1099 = vrot.lane.b32.xlu0 %v833, 112
      %v1100 = vpop.permute.xlu0 %1099
      %1101 = vrot.lane.b32.xlu0 %v834, 112
      %v1102 = vpop.permute.xlu0 %1101
      %1103 = vrot.lane.b32.xlu0 %v835, 112
      %v1104 = vpop.permute.xlu0 %1103
      %1105 = vrot.lane.b32.xlu0 %v836, 112
      %v1106 = vpop.permute.xlu0 %1105
      %1107 = vrot.lane.b32.xlu0 %v837, 112
      %v1108 = vpop.permute.xlu0 %1107
      %1109 = vrot.lane.b32.xlu0 %v841, 112
      %v1110 = vpop.permute.xlu0 %1109
      %v1128 = vrot.slane %v1078, 7
      %v1129 = vrot.slane %v1080, 7
      %v1130 = vrot.slane %v1082, 7
      %v1131 = vrot.slane %v1084, 7
      %v1132 = vrot.slane %v1086, 7
      %v1133 = vrot.slane %v1088, 7
      %v1134 = vrot.slane %v1090, 7
      %v1135 = vrot.slane %v1092, 7
      %v1136 = vrot.slane %v1094, 7
      %v1137 = vrot.slane %v1096, 7
      %v1138 = vrot.slane %v1098, 7
      %v1139 = vrot.slane %v1100, 7
      %v1140 = vrot.slane %v1102, 7
      %v1141 = vrot.slane %v1104, 7
      %v1142 = vrot.slane %v1106, 7
      %v1143 = vrot.slane %v1108, 7
      %v1144 = vrot.slane %v1110, 7
      %vm1145 = vcmp.lt.s32.totalorder %v654, 1
      %v1146 = vsel %vm1145, %v1142, %v1143
      %v1147 = vsel %vm1145, %v1141, %v1142
      %v1148 = vsel %vm1145, %v1140, %v1141
      %v1149 = vsel %vm1145, %v1139, %v1140
      %v1150 = vsel %vm1145, %v1138, %v1139
      %v1151 = vsel %vm1145, %v1137, %v1138
      %v1152 = vsel %vm1145, %v1136, %v1137
      %v1153 = vsel %vm1145, %v1135, %v1136
      %v1154 = vsel %vm1145, %v1134, %v1135
      %v1155 = vsel %vm1145, %v1133, %v1134
      %v1156 = vsel %vm1145, %v1132, %v1133
      %v1157 = vsel %vm1145, %v1131, %v1132
      %v1158 = vsel %vm1145, %v1130, %v1131
      %v1159 = vsel %vm1145, %v1129, %v1130
      %v1160 = vsel %vm1145, %v1128, %v1129
      %v1161 = vsel %vm1145, %v1144, %v1128
      %vm1162 = vcmp.ge.s32.totalorder %v1020, 1
      %vm1163 = vcmp.ge.s32.totalorder %v1021, 1
      %vm1164 = vcmp.ge.s32.totalorder %v1022, 1
      %vm1165 = vcmp.ge.s32.totalorder %v1023, 1
      %vm1166 = vcmp.ge.s32.totalorder %v1024, 1
      %vm1167 = vcmp.ge.s32.totalorder %v1025, 1
      %vm1168 = vcmp.ge.s32.totalorder %v1026, 1
      %vm1169 = vcmp.ge.s32.totalorder %v1027, 1
      %vm1170 = vcmp.ge.s32.totalorder %v1028, 1
      %vm1171 = vcmp.ge.s32.totalorder %v1029, 1
      %vm1172 = vcmp.ge.s32.totalorder %v1030, 1
      %vm1173 = vcmp.ge.s32.totalorder %v1031, 1
      %vm1174 = vcmp.ge.s32.totalorder %v1032, 1
      %vm1175 = vcmp.ge.s32.totalorder %v1033, 1
      %vm1176 = vcmp.ge.s32.totalorder %v1034, 1
      %vm1177 = vcmp.ge.s32.totalorder %v1035, 1
      %v1178 = vsel %vm1162, 1, 0
      %v1179 = vsel %vm1163, 1, 0
      %v1180 = vsel %vm1164, 1, 0
      %v1181 = vsel %vm1165, 1, 0
      %v1182 = vsel %vm1166, 1, 0
      %v1183 = vsel %vm1167, 1, 0
      %v1184 = vsel %vm1168, 1, 0
      %v1185 = vsel %vm1169, 1, 0
      %v1186 = vsel %vm1170, 1, 0
      %v1187 = vsel %vm1171, 1, 0
      %v1188 = vsel %vm1172, 1, 0
      %v1189 = vsel %vm1173, 1, 0
      %v1190 = vsel %vm1174, 1, 0
      %v1191 = vsel %vm1175, 1, 0
      %v1192 = vsel %vm1176, 1, 0
      %v1193 = vsel %vm1177, 1, 0
      %vm1194 = vcmp.eq.s32.totalorder %v1178, 1
      %vm1195 = vcmp.eq.s32.totalorder %v1179, 1
      %vm1196 = vcmp.eq.s32.totalorder %v1180, 1
      %vm1197 = vcmp.eq.s32.totalorder %v1181, 1
      %vm1198 = vcmp.eq.s32.totalorder %v1182, 1
      %vm1199 = vcmp.eq.s32.totalorder %v1183, 1
      %vm1200 = vcmp.eq.s32.totalorder %v1184, 1
      %vm1201 = vcmp.eq.s32.totalorder %v1185, 1
      %vm1202 = vcmp.eq.s32.totalorder %v1186, 1
      %vm1203 = vcmp.eq.s32.totalorder %v1187, 1
      %vm1204 = vcmp.eq.s32.totalorder %v1188, 1
      %vm1205 = vcmp.eq.s32.totalorder %v1189, 1
      %vm1206 = vcmp.eq.s32.totalorder %v1190, 1
      %vm1207 = vcmp.eq.s32.totalorder %v1191, 1
      %vm1208 = vcmp.eq.s32.totalorder %v1192, 1
      %vm1209 = vcmp.eq.s32.totalorder %v1193, 1
      %v1210 = vsel %vm1194, %v1161, 0.0
      %v1211 = vsel %vm1195, %v1160, 0.0
      %v1212 = vsel %vm1196, %v1159, 0.0
      %v1213 = vsel %vm1197, %v1158, 0.0
      %v1214 = vsel %vm1198, %v1157, 0.0
      %v1215 = vsel %vm1199, %v1156, 0.0
      %v1216 = vsel %vm1200, %v1155, 0.0
      %v1217 = vsel %vm1201, %v1154, 0.0
      %v1218 = vsel %vm1202, %v1153, 0.0
      %v1219 = vsel %vm1203, %v1152, 0.0
      %v1220 = vsel %vm1204, %v1151, 0.0
      %v1221 = vsel %vm1205, %v1150, 0.0
      %v1222 = vsel %vm1206, %v1149, 0.0
      %v1223 = vsel %vm1207, %v1148, 0.0
      %v1224 = vsel %vm1208, %v1147, 0.0
      %v1225 = vsel %vm1209, %v1146, 0.0
      %v1226 = vlaneseq
      %v1227 = vshrl.u32 %v1226, 7
      %v1228 = vsub.s32 0, %v1227
      %v1229 = vrot.slane %v842, %v1228
      %v1230 = vmul.f32 %v1210, %v1229
      %v1231 = vmul.f32 %v1211, %v1229
      %v1232 = vmul.f32 %v1212, %v1229
      %v1233 = vmul.f32 %v1213, %v1229
      %v1234 = vmul.f32 %v1214, %v1229
      %v1235 = vmul.f32 %v1215, %v1229
      %v1236 = vmul.f32 %v1216, %v1229
      %v1237 = vmul.f32 %v1217, %v1229
      %v1238 = vmul.f32 %v1218, %v1229
      %v1239 = vmul.f32 %v1219, %v1229
      %v1240 = vmul.f32 %v1220, %v1229
      %v1241 = vmul.f32 %v1221, %v1229
      %v1242 = vmul.f32 %v1222, %v1229
      %v1243 = vmul.f32 %v1223, %v1229
      %v1244 = vmul.f32 %v1224, %v1229
      %v1245 = vmul.f32 %v1225, %v1229
      %1262 = vrot.lane.b32.xlu0 %v1230, 16
      %v1263 = vpop.permute.xlu0 %1262
      %1264 = vrot.lane.b32.xlu0 %v1231, 16
      %v1265 = vpop.permute.xlu0 %1264
      %1266 = vrot.lane.b32.xlu0 %v1232, 16
      %v1267 = vpop.permute.xlu0 %1266
      %1268 = vrot.lane.b32.xlu0 %v1233, 16
      %v1269 = vpop.permute.xlu0 %1268
      %1270 = vrot.lane.b32.xlu0 %v1234, 16
      %v1271 = vpop.permute.xlu0 %1270
      %1272 = vrot.lane.b32.xlu0 %v1235, 16
      %v1273 = vpop.permute.xlu0 %1272
      %1274 = vrot.lane.b32.xlu0 %v1236, 16
      %v1275 = vpop.permute.xlu0 %1274
      %1276 = vrot.lane.b32.xlu0 %v1237, 16
      %v1277 = vpop.permute.xlu0 %1276
      %1278 = vrot.lane.b32.xlu0 %v1238, 16
      %v1279 = vpop.permute.xlu0 %1278
      %1280 = vrot.lane.b32.xlu0 %v1239, 16
      %v1281 = vpop.permute.xlu0 %1280
      %1282 = vrot.lane.b32.xlu0 %v1240, 16
      %v1283 = vpop.permute.xlu0 %1282
      %1284 = vrot.lane.b32.xlu0 %v1241, 16
      %v1285 = vpop.permute.xlu0 %1284
      %1286 = vrot.lane.b32.xlu0 %v1242, 16
      %v1287 = vpop.permute.xlu0 %1286
      %1288 = vrot.lane.b32.xlu0 %v1243, 16
      %v1289 = vpop.permute.xlu0 %1288
      %1290 = vrot.lane.b32.xlu0 %v1244, 16
      %v1291 = vpop.permute.xlu0 %1290
      %1292 = vrot.lane.b32.xlu0 %v1245, 16
      %v1293 = vpop.permute.xlu0 %1292
      %v1310 = vadd.f32 %v1044, %v1263
      %v1311 = vadd.f32 %v1045, %v1265
      %v1312 = vadd.f32 %v1046, %v1267
      %v1313 = vadd.f32 %v1047, %v1269
      %v1314 = vadd.f32 %v1048, %v1271
      %v1315 = vadd.f32 %v1049, %v1273
      %v1316 = vadd.f32 %v1050, %v1275
      %v1317 = vadd.f32 %v1051, %v1277
      %v1318 = vadd.f32 %v1052, %v1279
      %v1319 = vadd.f32 %v1053, %v1281
      %v1320 = vadd.f32 %v1054, %v1283
      %v1321 = vadd.f32 %v1055, %v1285
      %v1322 = vadd.f32 %v1056, %v1287
      %v1323 = vadd.f32 %v1057, %v1289
      %v1324 = vadd.f32 %v1058, %v1291
      %v1325 = vadd.f32 %v1059, %v1293
      %v1326 = vlaneseq
      %v1327 = vshrl.u32 %v1326, 7
      %v1328 = vsub.s32 1, %v1327
      %v1329 = vrot.slane %v842, %v1328
      %v1330 = vmul.f32 %v1078, %v1329
      %v1331 = vmul.f32 %v1080, %v1329
      %v1332 = vmul.f32 %v1082, %v1329
      %v1333 = vmul.f32 %v1084, %v1329
      %v1334 = vmul.f32 %v1086, %v1329
      %v1335 = vmul.f32 %v1088, %v1329
      %v1336 = vmul.f32 %v1090, %v1329
      %v1337 = vmul.f32 %v1092, %v1329
      %v1338 = vmul.f32 %v1094, %v1329
      %v1339 = vmul.f32 %v1096, %v1329
      %v1340 = vmul.f32 %v1098, %v1329
      %v1341 = vmul.f32 %v1100, %v1329
      %v1342 = vmul.f32 %v1102, %v1329
      %v1343 = vmul.f32 %v1104, %v1329
      %v1344 = vmul.f32 %v1106, %v1329
      %v1345 = vmul.f32 %v1108, %v1329
      %1362 = vrot.lane.b32.xlu0 %v1330, 16
      %v1363 = vpop.permute.xlu0 %1362
      %1364 = vrot.lane.b32.xlu0 %v1331, 16
      %v1365 = vpop.permute.xlu0 %1364
      %1366 = vrot.lane.b32.xlu0 %v1332, 16
      %v1367 = vpop.permute.xlu0 %1366
      %1368 = vrot.lane.b32.xlu0 %v1333, 16
      %v1369 = vpop.permute.xlu0 %1368
      %1370 = vrot.lane.b32.xlu0 %v1334, 16
      %v1371 = vpop.permute.xlu0 %1370
      %1372 = vrot.lane.b32.xlu0 %v1335, 16
      %v1373 = vpop.permute.xlu0 %1372
      %1374 = vrot.lane.b32.xlu0 %v1336, 16
      %v1375 = vpop.permute.xlu0 %1374
      %1376 = vrot.lane.b32.xlu0 %v1337, 16
      %v1377 = vpop.permute.xlu0 %1376
      %1378 = vrot.lane.b32.xlu0 %v1338, 16
      %v1379 = vpop.permute.xlu0 %1378
      %1380 = vrot.lane.b32.xlu0 %v1339, 16
      %v1381 = vpop.permute.xlu0 %1380
      %1382 = vrot.lane.b32.xlu0 %v1340, 16
      %v1383 = vpop.permute.xlu0 %1382
      %1384 = vrot.lane.b32.xlu0 %v1341, 16
      %v1385 = vpop.permute.xlu0 %1384
      %1386 = vrot.lane.b32.xlu0 %v1342, 16
      %v1387 = vpop.permute.xlu0 %1386
      %1388 = vrot.lane.b32.xlu0 %v1343, 16
      %v1389 = vpop.permute.xlu0 %1388
      %1390 = vrot.lane.b32.xlu0 %v1344, 16
      %v1391 = vpop.permute.xlu0 %1390
      %1392 = vrot.lane.b32.xlu0 %v1345, 16
      %v1393 = vpop.permute.xlu0 %1392
      %v1410 = vadd.f32 %v1310, %v1363
      %v1411 = vadd.f32 %v1311, %v1365
      %v1412 = vadd.f32 %v1312, %v1367
      %v1413 = vadd.f32 %v1313, %v1369
      %v1414 = vadd.f32 %v1314, %v1371
      %v1415 = vadd.f32 %v1315, %v1373
      %v1416 = vadd.f32 %v1316, %v1375
      %v1417 = vadd.f32 %v1317, %v1377
      %v1418 = vadd.f32 %v1318, %v1379
      %v1419 = vadd.f32 %v1319, %v1381
      %v1420 = vadd.f32 %v1320, %v1383
      %v1421 = vadd.f32 %v1321, %v1385
      %v1422 = vadd.f32 %v1322, %v1387
      %v1423 = vadd.f32 %v1323, %v1389
      %v1424 = vadd.f32 %v1324, %v1391
      %v1425 = vadd.f32 %v1325, %v1393
      %1427 = vrot.lane.b32.xlu0 %v838, 112
      %v1428 = vpop.permute.xlu0 %1427
      %v1430 = vrot.slane %v1078, 1
      %v1431 = vrot.slane %v1080, 1
      %v1432 = vrot.slane %v1082, 1
      %v1433 = vrot.slane %v1084, 1
      %v1434 = vrot.slane %v1086, 1
      %v1435 = vrot.slane %v1088, 1
      %v1436 = vrot.slane %v1090, 1
      %v1437 = vrot.slane %v1092, 1
      %v1438 = vrot.slane %v1094, 1
      %v1439 = vrot.slane %v1096, 1
      %v1440 = vrot.slane %v1098, 1
      %v1441 = vrot.slane %v1100, 1
      %v1442 = vrot.slane %v1102, 1
      %v1443 = vrot.slane %v1104, 1
      %v1444 = vrot.slane %v1106, 1
      %v1445 = vrot.slane %v1108, 1
      %v1446 = vrot.slane %v1428, 1
      %vm1447 = vcmp.lt.s32.totalorder %v654, 7
      %v1448 = vsel %vm1447, %v1445, %v1446
      %v1449 = vsel %vm1447, %v1444, %v1445
      %v1450 = vsel %vm1447, %v1443, %v1444
      %v1451 = vsel %vm1447, %v1442, %v1443
      %v1452 = vsel %vm1447, %v1441, %v1442
      %v1453 = vsel %vm1447, %v1440, %v1441
      %v1454 = vsel %vm1447, %v1439, %v1440
      %v1455 = vsel %vm1447, %v1438, %v1439
      %v1456 = vsel %vm1447, %v1437, %v1438
      %v1457 = vsel %vm1447, %v1436, %v1437
      %v1458 = vsel %vm1447, %v1435, %v1436
      %v1459 = vsel %vm1447, %v1434, %v1435
      %v1460 = vsel %vm1447, %v1433, %v1434
      %v1461 = vsel %vm1447, %v1432, %v1433
      %v1462 = vsel %vm1447, %v1431, %v1432
      %v1463 = vsel %vm1447, %v1430, %v1431
      %vm1464 = vcmp.lt.s32.totalorder %v1020, 15
      %vm1465 = vcmp.lt.s32.totalorder %v1021, 15
      %vm1466 = vcmp.lt.s32.totalorder %v1022, 15
      %vm1467 = vcmp.lt.s32.totalorder %v1023, 15
      %vm1468 = vcmp.lt.s32.totalorder %v1024, 15
      %vm1469 = vcmp.lt.s32.totalorder %v1025, 15
      %vm1470 = vcmp.lt.s32.totalorder %v1026, 15
      %vm1471 = vcmp.lt.s32.totalorder %v1027, 15
      %vm1472 = vcmp.lt.s32.totalorder %v1028, 15
      %vm1473 = vcmp.lt.s32.totalorder %v1029, 15
      %vm1474 = vcmp.lt.s32.totalorder %v1030, 15
      %vm1475 = vcmp.lt.s32.totalorder %v1031, 15
      %vm1476 = vcmp.lt.s32.totalorder %v1032, 15
      %vm1477 = vcmp.lt.s32.totalorder %v1033, 15
      %vm1478 = vcmp.lt.s32.totalorder %v1034, 15
      %vm1479 = vcmp.lt.s32.totalorder %v1035, 15
      %v1480 = vsel %vm1464, 1, 0
      %v1481 = vsel %vm1465, 1, 0
      %v1482 = vsel %vm1466, 1, 0
      %v1483 = vsel %vm1467, 1, 0
      %v1484 = vsel %vm1468, 1, 0
      %v1485 = vsel %vm1469, 1, 0
      %v1486 = vsel %vm1470, 1, 0
      %v1487 = vsel %vm1471, 1, 0
      %v1488 = vsel %vm1472, 1, 0
      %v1489 = vsel %vm1473, 1, 0
      %v1490 = vsel %vm1474, 1, 0
      %v1491 = vsel %vm1475, 1, 0
      %v1492 = vsel %vm1476, 1, 0
      %v1493 = vsel %vm1477, 1, 0
      %v1494 = vsel %vm1478, 1, 0
      %v1495 = vsel %vm1479, 1, 0
      %vm1496 = vcmp.eq.s32.totalorder %v1480, 1
      %vm1497 = vcmp.eq.s32.totalorder %v1481, 1
      %vm1498 = vcmp.eq.s32.totalorder %v1482, 1
      %vm1499 = vcmp.eq.s32.totalorder %v1483, 1
      %vm1500 = vcmp.eq.s32.totalorder %v1484, 1
      %vm1501 = vcmp.eq.s32.totalorder %v1485, 1
      %vm1502 = vcmp.eq.s32.totalorder %v1486, 1
      %vm1503 = vcmp.eq.s32.totalorder %v1487, 1
      %vm1504 = vcmp.eq.s32.totalorder %v1488, 1
      %vm1505 = vcmp.eq.s32.totalorder %v1489, 1
      %vm1506 = vcmp.eq.s32.totalorder %v1490, 1
      %vm1507 = vcmp.eq.s32.totalorder %v1491, 1
      %vm1508 = vcmp.eq.s32.totalorder %v1492, 1
      %vm1509 = vcmp.eq.s32.totalorder %v1493, 1
      %vm1510 = vcmp.eq.s32.totalorder %v1494, 1
      %vm1511 = vcmp.eq.s32.totalorder %v1495, 1
      %v1512 = vsel %vm1496, %v1463, 0.0
      %v1513 = vsel %vm1497, %v1462, 0.0
      %v1514 = vsel %vm1498, %v1461, 0.0
      %v1515 = vsel %vm1499, %v1460, 0.0
      %v1516 = vsel %vm1500, %v1459, 0.0
      %v1517 = vsel %vm1501, %v1458, 0.0
      %v1518 = vsel %vm1502, %v1457, 0.0
      %v1519 = vsel %vm1503, %v1456, 0.0
      %v1520 = vsel %vm1504, %v1455, 0.0
      %v1521 = vsel %vm1505, %v1454, 0.0
      %v1522 = vsel %vm1506, %v1453, 0.0
      %v1523 = vsel %vm1507, %v1452, 0.0
      %v1524 = vsel %vm1508, %v1451, 0.0
      %v1525 = vsel %vm1509, %v1450, 0.0
      %v1526 = vsel %vm1510, %v1449, 0.0
      %v1527 = vsel %vm1511, %v1448, 0.0
      %v1528 = vlaneseq
      %v1529 = vshrl.u32 %v1528, 7
      %v1530 = vsub.s32 2, %v1529
      %v1531 = vrot.slane %v842, %v1530
      %v1532 = vmul.f32 %v1512, %v1531
      %v1533 = vmul.f32 %v1513, %v1531
      %v1534 = vmul.f32 %v1514, %v1531
      %v1535 = vmul.f32 %v1515, %v1531
      %v1536 = vmul.f32 %v1516, %v1531
      %v1537 = vmul.f32 %v1517, %v1531
      %v1538 = vmul.f32 %v1518, %v1531
      %v1539 = vmul.f32 %v1519, %v1531
      %v1540 = vmul.f32 %v1520, %v1531
      %v1541 = vmul.f32 %v1521, %v1531
      %v1542 = vmul.f32 %v1522, %v1531
      %v1543 = vmul.f32 %v1523, %v1531
      %v1544 = vmul.f32 %v1524, %v1531
      %v1545 = vmul.f32 %v1525, %v1531
      %v1546 = vmul.f32 %v1526, %v1531
      %v1547 = vmul.f32 %v1527, %v1531
      %1564 = vrot.lane.b32.xlu0 %v1532, 16
      %v1565 = vpop.permute.xlu0 %1564
      %1566 = vrot.lane.b32.xlu0 %v1533, 16
      %v1567 = vpop.permute.xlu0 %1566
      %1568 = vrot.lane.b32.xlu0 %v1534, 16
      %v1569 = vpop.permute.xlu0 %1568
      %1570 = vrot.lane.b32.xlu0 %v1535, 16
      %v1571 = vpop.permute.xlu0 %1570
      %1572 = vrot.lane.b32.xlu0 %v1536, 16
      %v1573 = vpop.permute.xlu0 %1572
      %1574 = vrot.lane.b32.xlu0 %v1537, 16
      %v1575 = vpop.permute.xlu0 %1574
      %1576 = vrot.lane.b32.xlu0 %v1538, 16
      %v1577 = vpop.permute.xlu0 %1576
      %1578 = vrot.lane.b32.xlu0 %v1539, 16
      %v1579 = vpop.permute.xlu0 %1578
      %1580 = vrot.lane.b32.xlu0 %v1540, 16
      %v1581 = vpop.permute.xlu0 %1580
      %1582 = vrot.lane.b32.xlu0 %v1541, 16
      %v1583 = vpop.permute.xlu0 %1582
      %1584 = vrot.lane.b32.xlu0 %v1542, 16
      %v1585 = vpop.permute.xlu0 %1584
      %1586 = vrot.lane.b32.xlu0 %v1543, 16
      %v1587 = vpop.permute.xlu0 %1586
      %1588 = vrot.lane.b32.xlu0 %v1544, 16
      %v1589 = vpop.permute.xlu0 %1588
      %1590 = vrot.lane.b32.xlu0 %v1545, 16
      %v1591 = vpop.permute.xlu0 %1590
      %1592 = vrot.lane.b32.xlu0 %v1546, 16
      %v1593 = vpop.permute.xlu0 %1592
      %1594 = vrot.lane.b32.xlu0 %v1547, 16
      %v1595 = vpop.permute.xlu0 %1594
      %v1612 = vadd.f32 %v1410, %v1565
      %v1613 = vadd.f32 %v1411, %v1567
      %v1614 = vadd.f32 %v1412, %v1569
      %v1615 = vadd.f32 %v1413, %v1571
      %v1616 = vadd.f32 %v1414, %v1573
      %v1617 = vadd.f32 %v1415, %v1575
      %v1618 = vadd.f32 %v1416, %v1577
      %v1619 = vadd.f32 %v1417, %v1579
      %v1620 = vadd.f32 %v1418, %v1581
      %v1621 = vadd.f32 %v1419, %v1583
      %v1622 = vadd.f32 %v1420, %v1585
      %v1623 = vadd.f32 %v1421, %v1587
      %v1624 = vadd.f32 %v1422, %v1589
      %v1625 = vadd.f32 %v1423, %v1591
      %v1626 = vadd.f32 %v1424, %v1593
      %v1627 = vadd.f32 %v1425, %v1595
      %1629 = vrot.lane.b32.xlu0 %v839, 112
      %v1630 = vpop.permute.xlu0 %1629
      %v1632 = vrot.slane %v1428, 7
      %v1633 = vrot.slane %v1630, 7
      %v1634 = vsel %vm1145, %v1632, %v1633
      %v1635 = vsel %vm1145, %v1143, %v1632
      %v1636 = vsel %vm1194, %v1159, 0.0
      %v1637 = vsel %vm1195, %v1158, 0.0
      %v1638 = vsel %vm1196, %v1157, 0.0
      %v1639 = vsel %vm1197, %v1156, 0.0
      %v1640 = vsel %vm1198, %v1155, 0.0
      %v1641 = vsel %vm1199, %v1154, 0.0
      %v1642 = vsel %vm1200, %v1153, 0.0
      %v1643 = vsel %vm1201, %v1152, 0.0
      %v1644 = vsel %vm1202, %v1151, 0.0
      %v1645 = vsel %vm1203, %v1150, 0.0
      %v1646 = vsel %vm1204, %v1149, 0.0
      %v1647 = vsel %vm1205, %v1148, 0.0
      %v1648 = vsel %vm1206, %v1147, 0.0
      %v1649 = vsel %vm1207, %v1146, 0.0
      %v1650 = vsel %vm1208, %v1635, 0.0
      %v1651 = vsel %vm1209, %v1634, 0.0
      %v1652 = vlaneseq
      %v1653 = vshrl.u32 %v1652, 7
      %v1654 = vsub.s32 3, %v1653
      %v1655 = vrot.slane %v842, %v1654
      %v1656 = vmul.f32 %v1636, %v1655
      %v1657 = vmul.f32 %v1637, %v1655
      %v1658 = vmul.f32 %v1638, %v1655
      %v1659 = vmul.f32 %v1639, %v1655
      %v1660 = vmul.f32 %v1640, %v1655
      %v1661 = vmul.f32 %v1641, %v1655
      %v1662 = vmul.f32 %v1642, %v1655
      %v1663 = vmul.f32 %v1643, %v1655
      %v1664 = vmul.f32 %v1644, %v1655
      %v1665 = vmul.f32 %v1645, %v1655
      %v1666 = vmul.f32 %v1646, %v1655
      %v1667 = vmul.f32 %v1647, %v1655
      %v1668 = vmul.f32 %v1648, %v1655
      %v1669 = vmul.f32 %v1649, %v1655
      %v1670 = vmul.f32 %v1650, %v1655
      %v1671 = vmul.f32 %v1651, %v1655
      %1688 = vrot.lane.b32.xlu0 %v1656, 16
      %v1689 = vpop.permute.xlu0 %1688
      %1690 = vrot.lane.b32.xlu0 %v1657, 16
      %v1691 = vpop.permute.xlu0 %1690
      %1692 = vrot.lane.b32.xlu0 %v1658, 16
      %v1693 = vpop.permute.xlu0 %1692
      %1694 = vrot.lane.b32.xlu0 %v1659, 16
      %v1695 = vpop.permute.xlu0 %1694
      %1696 = vrot.lane.b32.xlu0 %v1660, 16
      %v1697 = vpop.permute.xlu0 %1696
      %1698 = vrot.lane.b32.xlu0 %v1661, 16
      %v1699 = vpop.permute.xlu0 %1698
      %1700 = vrot.lane.b32.xlu0 %v1662, 16
      %v1701 = vpop.permute.xlu0 %1700
      %1702 = vrot.lane.b32.xlu0 %v1663, 16
      %v1703 = vpop.permute.xlu0 %1702
      %1704 = vrot.lane.b32.xlu0 %v1664, 16
      %v1705 = vpop.permute.xlu0 %1704
      %1706 = vrot.lane.b32.xlu0 %v1665, 16
      %v1707 = vpop.permute.xlu0 %1706
      %1708 = vrot.lane.b32.xlu0 %v1666, 16
      %v1709 = vpop.permute.xlu0 %1708
      %1710 = vrot.lane.b32.xlu0 %v1667, 16
      %v1711 = vpop.permute.xlu0 %1710
      %1712 = vrot.lane.b32.xlu0 %v1668, 16
      %v1713 = vpop.permute.xlu0 %1712
      %1714 = vrot.lane.b32.xlu0 %v1669, 16
      %v1715 = vpop.permute.xlu0 %1714
      %1716 = vrot.lane.b32.xlu0 %v1670, 16
      %v1717 = vpop.permute.xlu0 %1716
      %1718 = vrot.lane.b32.xlu0 %v1671, 16
      %v1719 = vpop.permute.xlu0 %1718
      %v1736 = vadd.f32 %v1612, %v1689
      %v1737 = vadd.f32 %v1613, %v1691
      %v1738 = vadd.f32 %v1614, %v1693
      %v1739 = vadd.f32 %v1615, %v1695
      %v1740 = vadd.f32 %v1616, %v1697
      %v1741 = vadd.f32 %v1617, %v1699
      %v1742 = vadd.f32 %v1618, %v1701
      %v1743 = vadd.f32 %v1619, %v1703
      %v1744 = vadd.f32 %v1620, %v1705
      %v1745 = vadd.f32 %v1621, %v1707
      %v1746 = vadd.f32 %v1622, %v1709
      %v1747 = vadd.f32 %v1623, %v1711
      %v1748 = vadd.f32 %v1624, %v1713
      %v1749 = vadd.f32 %v1625, %v1715
      %v1750 = vadd.f32 %v1626, %v1717
      %v1751 = vadd.f32 %v1627, %v1719
      %1753 = vrot.lane.b32.xlu0 %v840, 112
      %v1754 = vpop.permute.xlu0 %1753
      %v1756 = vrot.slane %v1630, 1
      %v1757 = vrot.slane %v1754, 1
      %v1758 = vsel %vm1447, %v1756, %v1757
      %v1759 = vsel %vm1447, %v1446, %v1756
      %v1760 = vsel %vm1496, %v1461, 0.0
      %v1761 = vsel %vm1497, %v1460, 0.0
      %v1762 = vsel %vm1498, %v1459, 0.0
      %v1763 = vsel %vm1499, %v1458, 0.0
      %v1764 = vsel %vm1500, %v1457, 0.0
      %v1765 = vsel %vm1501, %v1456, 0.0
      %v1766 = vsel %vm1502, %v1455, 0.0
      %v1767 = vsel %vm1503, %v1454, 0.0
      %v1768 = vsel %vm1504, %v1453, 0.0
      %v1769 = vsel %vm1505, %v1452, 0.0
      %v1770 = vsel %vm1506, %v1451, 0.0
      %v1771 = vsel %vm1507, %v1450, 0.0
      %v1772 = vsel %vm1508, %v1449, 0.0
      %v1773 = vsel %vm1509, %v1448, 0.0
      %v1774 = vsel %vm1510, %v1759, 0.0
      %v1775 = vsel %vm1511, %v1758, 0.0
      %v1776 = vlaneseq
      %v1777 = vshrl.u32 %v1776, 7
      %v1778 = vsub.s32 5, %v1777
      %v1779 = vrot.slane %v842, %v1778
      %v1780 = vmul.f32 %v1760, %v1779
      %v1781 = vmul.f32 %v1761, %v1779
      %v1782 = vmul.f32 %v1762, %v1779
      %v1783 = vmul.f32 %v1763, %v1779
      %v1784 = vmul.f32 %v1764, %v1779
      %v1785 = vmul.f32 %v1765, %v1779
      %v1786 = vmul.f32 %v1766, %v1779
      %v1787 = vmul.f32 %v1767, %v1779
      %v1788 = vmul.f32 %v1768, %v1779
      %v1789 = vmul.f32 %v1769, %v1779
      %v1790 = vmul.f32 %v1770, %v1779
      %v1791 = vmul.f32 %v1771, %v1779
      %v1792 = vmul.f32 %v1772, %v1779
      %v1793 = vmul.f32 %v1773, %v1779
      %v1794 = vmul.f32 %v1774, %v1779
      %v1795 = vmul.f32 %v1775, %v1779
      %1812 = vrot.lane.b32.xlu0 %v1780, 16
      %v1813 = vpop.permute.xlu0 %1812
      %1814 = vrot.lane.b32.xlu0 %v1781, 16
      %v1815 = vpop.permute.xlu0 %1814
      %1816 = vrot.lane.b32.xlu0 %v1782, 16
      %v1817 = vpop.permute.xlu0 %1816
      %1818 = vrot.lane.b32.xlu0 %v1783, 16
      %v1819 = vpop.permute.xlu0 %1818
      %1820 = vrot.lane.b32.xlu0 %v1784, 16
      %v1821 = vpop.permute.xlu0 %1820
      %1822 = vrot.lane.b32.xlu0 %v1785, 16
      %v1823 = vpop.permute.xlu0 %1822
      %1824 = vrot.lane.b32.xlu0 %v1786, 16
      %v1825 = vpop.permute.xlu0 %1824
      %1826 = vrot.lane.b32.xlu0 %v1787, 16
      %v1827 = vpop.permute.xlu0 %1826
      %1828 = vrot.lane.b32.xlu0 %v1788, 16
      %v1829 = vpop.permute.xlu0 %1828
      %1830 = vrot.lane.b32.xlu0 %v1789, 16
      %v1831 = vpop.permute.xlu0 %1830
      %1832 = vrot.lane.b32.xlu0 %v1790, 16
      %v1833 = vpop.permute.xlu0 %1832
      %1834 = vrot.lane.b32.xlu0 %v1791, 16
      %v1835 = vpop.permute.xlu0 %1834
      %1836 = vrot.lane.b32.xlu0 %v1792, 16
      %v1837 = vpop.permute.xlu0 %1836
      %1838 = vrot.lane.b32.xlu0 %v1793, 16
      %v1839 = vpop.permute.xlu0 %1838
      %1840 = vrot.lane.b32.xlu0 %v1794, 16
      %v1841 = vpop.permute.xlu0 %1840
      %1842 = vrot.lane.b32.xlu0 %v1795, 16
      %v1843 = vpop.permute.xlu0 %1842
      %v1860 = vadd.f32 %v1736, %v1813
      %v1861 = vadd.f32 %v1737, %v1815
      %v1862 = vadd.f32 %v1738, %v1817
      %v1863 = vadd.f32 %v1739, %v1819
      %v1864 = vadd.f32 %v1740, %v1821
      %v1865 = vadd.f32 %v1741, %v1823
      %v1866 = vadd.f32 %v1742, %v1825
      %v1867 = vadd.f32 %v1743, %v1827
      %v1868 = vadd.f32 %v1744, %v1829
      %v1869 = vadd.f32 %v1745, %v1831
      %v1870 = vadd.f32 %v1746, %v1833
      %v1871 = vadd.f32 %v1747, %v1835
      %v1872 = vadd.f32 %v1748, %v1837
      %v1873 = vadd.f32 %v1749, %v1839
      %v1874 = vadd.f32 %v1750, %v1841
      %v1875 = vadd.f32 %v1751, %v1843
      %v1876 = vrot.slane %v1754, 7
      %v1877 = vsel %vm1145, %v1876, %v1144
      %v1878 = vsel %vm1145, %v1633, %v1876
      %v1879 = vsel %vm1194, %v1157, 0.0
      %v1880 = vsel %vm1195, %v1156, 0.0
      %v1881 = vsel %vm1196, %v1155, 0.0
      %v1882 = vsel %vm1197, %v1154, 0.0
      %v1883 = vsel %vm1198, %v1153, 0.0
      %v1884 = vsel %vm1199, %v1152, 0.0
      %v1885 = vsel %vm1200, %v1151, 0.0
      %v1886 = vsel %vm1201, %v1150, 0.0
      %v1887 = vsel %vm1202, %v1149, 0.0
      %v1888 = vsel %vm1203, %v1148, 0.0
      %v1889 = vsel %vm1204, %v1147, 0.0
      %v1890 = vsel %vm1205, %v1146, 0.0
      %v1891 = vsel %vm1206, %v1635, 0.0
      %v1892 = vsel %vm1207, %v1634, 0.0
      %v1893 = vsel %vm1208, %v1878, 0.0
      %v1894 = vsel %vm1209, %v1877, 0.0
      %v1895 = vlaneseq
      %v1896 = vshrl.u32 %v1895, 7
      %v1897 = vsub.s32 6, %v1896
      %v1898 = vrot.slane %v842, %v1897
      %v1899 = vmul.f32 %v1879, %v1898
      %v1900 = vmul.f32 %v1880, %v1898
      %v1901 = vmul.f32 %v1881, %v1898
      %v1902 = vmul.f32 %v1882, %v1898
      %v1903 = vmul.f32 %v1883, %v1898
      %v1904 = vmul.f32 %v1884, %v1898
      %v1905 = vmul.f32 %v1885, %v1898
      %v1906 = vmul.f32 %v1886, %v1898
      %v1907 = vmul.f32 %v1887, %v1898
      %v1908 = vmul.f32 %v1888, %v1898
      %v1909 = vmul.f32 %v1889, %v1898
      %v1910 = vmul.f32 %v1890, %v1898
      %v1911 = vmul.f32 %v1891, %v1898
      %v1912 = vmul.f32 %v1892, %v1898
      %v1913 = vmul.f32 %v1893, %v1898
      %v1914 = vmul.f32 %v1894, %v1898
      %1931 = vrot.lane.b32.xlu0 %v1899, 16
      %v1932 = vpop.permute.xlu0 %1931
      %1933 = vrot.lane.b32.xlu0 %v1900, 16
      %v1934 = vpop.permute.xlu0 %1933
      %1935 = vrot.lane.b32.xlu0 %v1901, 16
      %v1936 = vpop.permute.xlu0 %1935
      %1937 = vrot.lane.b32.xlu0 %v1902, 16
      %v1938 = vpop.permute.xlu0 %1937
      %1939 = vrot.lane.b32.xlu0 %v1903, 16
      %v1940 = vpop.permute.xlu0 %1939
      %1941 = vrot.lane.b32.xlu0 %v1904, 16
      %v1942 = vpop.permute.xlu0 %1941
      %1943 = vrot.lane.b32.xlu0 %v1905, 16
      %v1944 = vpop.permute.xlu0 %1943
      %1945 = vrot.lane.b32.xlu0 %v1906, 16
      %v1946 = vpop.permute.xlu0 %1945
      %1947 = vrot.lane.b32.xlu0 %v1907, 16
      %v1948 = vpop.permute.xlu0 %1947
      %1949 = vrot.lane.b32.xlu0 %v1908, 16
      %v1950 = vpop.permute.xlu0 %1949
      %1951 = vrot.lane.b32.xlu0 %v1909, 16
      %v1952 = vpop.permute.xlu0 %1951
      %1953 = vrot.lane.b32.xlu0 %v1910, 16
      %v1954 = vpop.permute.xlu0 %1953
      %1955 = vrot.lane.b32.xlu0 %v1911, 16
      %v1956 = vpop.permute.xlu0 %1955
      %1957 = vrot.lane.b32.xlu0 %v1912, 16
      %v1958 = vpop.permute.xlu0 %1957
      %1959 = vrot.lane.b32.xlu0 %v1913, 16
      %v1960 = vpop.permute.xlu0 %1959
      %1961 = vrot.lane.b32.xlu0 %v1914, 16
      %v1962 = vpop.permute.xlu0 %1961
      %v1979 = vadd.f32 %v1860, %v1932
      %v1980 = vadd.f32 %v1861, %v1934
      %v1981 = vadd.f32 %v1862, %v1936
      %v1982 = vadd.f32 %v1863, %v1938
      %v1983 = vadd.f32 %v1864, %v1940
      %v1984 = vadd.f32 %v1865, %v1942
      %v1985 = vadd.f32 %v1866, %v1944
      %v1986 = vadd.f32 %v1867, %v1946
      %v1987 = vadd.f32 %v1868, %v1948
      %v1988 = vadd.f32 %v1869, %v1950
      %v1989 = vadd.f32 %v1870, %v1952
      %v1990 = vadd.f32 %v1871, %v1954
      %v1991 = vadd.f32 %v1872, %v1956
      %v1992 = vadd.f32 %v1873, %v1958
      %v1993 = vadd.f32 %v1874, %v1960
      %v1994 = vadd.f32 %v1875, %v1962
      %v1995 = vlaneseq
      %v1996 = vshrl.u32 %v1995, 7
      %v1997 = vsub.s32 7, %v1996
      %v1998 = vrot.slane %v842, %v1997
      %v1999 = vmul.f32 %v1086, %v1998
      %v2000 = vmul.f32 %v1088, %v1998
      %v2001 = vmul.f32 %v1090, %v1998
      %v2002 = vmul.f32 %v1092, %v1998
      %v2003 = vmul.f32 %v1094, %v1998
      %v2004 = vmul.f32 %v1096, %v1998
      %v2005 = vmul.f32 %v1098, %v1998
      %v2006 = vmul.f32 %v1100, %v1998
      %v2007 = vmul.f32 %v1102, %v1998
      %v2008 = vmul.f32 %v1104, %v1998
      %v2009 = vmul.f32 %v1106, %v1998
      %v2010 = vmul.f32 %v1108, %v1998
      %v2011 = vmul.f32 %v1428, %v1998
      %v2012 = vmul.f32 %v1630, %v1998
      %v2013 = vmul.f32 %v1754, %v1998
      %v2014 = vmul.f32 %v1110, %v1998
      %2031 = vrot.lane.b32.xlu0 %v1999, 16
      %v2032 = vpop.permute.xlu0 %2031
      %2033 = vrot.lane.b32.xlu0 %v2000, 16
      %v2034 = vpop.permute.xlu0 %2033
      %2035 = vrot.lane.b32.xlu0 %v2001, 16
      %v2036 = vpop.permute.xlu0 %2035
      %2037 = vrot.lane.b32.xlu0 %v2002, 16
      %v2038 = vpop.permute.xlu0 %2037
      %2039 = vrot.lane.b32.xlu0 %v2003, 16
      %v2040 = vpop.permute.xlu0 %2039
      %2041 = vrot.lane.b32.xlu0 %v2004, 16
      %v2042 = vpop.permute.xlu0 %2041
      %2043 = vrot.lane.b32.xlu0 %v2005, 16
      %v2044 = vpop.permute.xlu0 %2043
      %2045 = vrot.lane.b32.xlu0 %v2006, 16
      %v2046 = vpop.permute.xlu0 %2045
      %2047 = vrot.lane.b32.xlu0 %v2007, 16
      %v2048 = vpop.permute.xlu0 %2047
      %2049 = vrot.lane.b32.xlu0 %v2008, 16
      %v2050 = vpop.permute.xlu0 %2049
      %2051 = vrot.lane.b32.xlu0 %v2009, 16
      %v2052 = vpop.permute.xlu0 %2051
      %2053 = vrot.lane.b32.xlu0 %v2010, 16
      %v2054 = vpop.permute.xlu0 %2053
      %2055 = vrot.lane.b32.xlu0 %v2011, 16
      %v2056 = vpop.permute.xlu0 %2055
      %2057 = vrot.lane.b32.xlu0 %v2012, 16
      %v2058 = vpop.permute.xlu0 %2057
      %2059 = vrot.lane.b32.xlu0 %v2013, 16
      %v2060 = vpop.permute.xlu0 %2059
      %2061 = vrot.lane.b32.xlu0 %v2014, 16
      %v2062 = vpop.permute.xlu0 %2061
      %v2079 = vadd.f32 %v1979, %v2032
      %v2080 = vadd.f32 %v1980, %v2034
      %v2081 = vadd.f32 %v1981, %v2036
      %v2082 = vadd.f32 %v1982, %v2038
      %v2083 = vadd.f32 %v1983, %v2040
      %v2084 = vadd.f32 %v1984, %v2042
      %v2085 = vadd.f32 %v1985, %v2044
      %v2086 = vadd.f32 %v1986, %v2046
      %v2087 = vadd.f32 %v1987, %v2048
      %v2088 = vadd.f32 %v1988, %v2050
      %v2089 = vadd.f32 %v1989, %v2052
      %v2090 = vadd.f32 %v1990, %v2054
      %v2091 = vadd.f32 %v1991, %v2056
      %v2092 = vadd.f32 %v1992, %v2058
      %v2093 = vadd.f32 %v1993, %v2060
      %v2094 = vadd.f32 %v1994, %v2062
      %v2095 = vrot.slane %v1110, 1
      %v2096 = vsel %vm1447, %v1757, %v2095
      %v2097 = vsel %vm1447, %v2095, %v1430
      %v2098 = vsel %vm1496, %v1459, 0.0
      %v2099 = vsel %vm1497, %v1458, 0.0
      %v2100 = vsel %vm1498, %v1457, 0.0
      %v2101 = vsel %vm1499, %v1456, 0.0
      %v2102 = vsel %vm1500, %v1455, 0.0
      %v2103 = vsel %vm1501, %v1454, 0.0
      %v2104 = vsel %vm1502, %v1453, 0.0
      %v2105 = vsel %vm1503, %v1452, 0.0
      %v2106 = vsel %vm1504, %v1451, 0.0
      %v2107 = vsel %vm1505, %v1450, 0.0
      %v2108 = vsel %vm1506, %v1449, 0.0
      %v2109 = vsel %vm1507, %v1448, 0.0
      %v2110 = vsel %vm1508, %v1759, 0.0
      %v2111 = vsel %vm1509, %v1758, 0.0
      %v2112 = vsel %vm1510, %v2096, 0.0
      %v2113 = vsel %vm1511, %v2097, 0.0
      %v2114 = vlaneseq
      %v2115 = vshrl.u32 %v2114, 7
      %v2116 = vsub.s32 0, %v2115
      %v2117 = vrot.slane %v843, %v2116
      %v2118 = vmul.f32 %v2098, %v2117
      %v2119 = vmul.f32 %v2099, %v2117
      %v2120 = vmul.f32 %v2100, %v2117
      %v2121 = vmul.f32 %v2101, %v2117
      %v2122 = vmul.f32 %v2102, %v2117
      %v2123 = vmul.f32 %v2103, %v2117
      %v2124 = vmul.f32 %v2104, %v2117
      %v2125 = vmul.f32 %v2105, %v2117
      %v2126 = vmul.f32 %v2106, %v2117
      %v2127 = vmul.f32 %v2107, %v2117
      %v2128 = vmul.f32 %v2108, %v2117
      %v2129 = vmul.f32 %v2109, %v2117
      %v2130 = vmul.f32 %v2110, %v2117
      %v2131 = vmul.f32 %v2111, %v2117
      %v2132 = vmul.f32 %v2112, %v2117
      %v2133 = vmul.f32 %v2113, %v2117
      %2150 = vrot.lane.b32.xlu0 %v2118, 16
      %v2151 = vpop.permute.xlu0 %2150
      %2152 = vrot.lane.b32.xlu0 %v2119, 16
      %v2153 = vpop.permute.xlu0 %2152
      %2154 = vrot.lane.b32.xlu0 %v2120, 16
      %v2155 = vpop.permute.xlu0 %2154
      %2156 = vrot.lane.b32.xlu0 %v2121, 16
      %v2157 = vpop.permute.xlu0 %2156
      %2158 = vrot.lane.b32.xlu0 %v2122, 16
      %v2159 = vpop.permute.xlu0 %2158
      %2160 = vrot.lane.b32.xlu0 %v2123, 16
      %v2161 = vpop.permute.xlu0 %2160
      %2162 = vrot.lane.b32.xlu0 %v2124, 16
      %v2163 = vpop.permute.xlu0 %2162
      %2164 = vrot.lane.b32.xlu0 %v2125, 16
      %v2165 = vpop.permute.xlu0 %2164
      %2166 = vrot.lane.b32.xlu0 %v2126, 16
      %v2167 = vpop.permute.xlu0 %2166
      %2168 = vrot.lane.b32.xlu0 %v2127, 16
      %v2169 = vpop.permute.xlu0 %2168
      %2170 = vrot.lane.b32.xlu0 %v2128, 16
      %v2171 = vpop.permute.xlu0 %2170
      %2172 = vrot.lane.b32.xlu0 %v2129, 16
      %v2173 = vpop.permute.xlu0 %2172
      %2174 = vrot.lane.b32.xlu0 %v2130, 16
      %v2175 = vpop.permute.xlu0 %2174
      %2176 = vrot.lane.b32.xlu0 %v2131, 16
      %v2177 = vpop.permute.xlu0 %2176
      %2178 = vrot.lane.b32.xlu0 %v2132, 16
      %v2179 = vpop.permute.xlu0 %2178
      %2180 = vrot.lane.b32.xlu0 %v2133, 16
      %v2181 = vpop.permute.xlu0 %2180
      %v2198 = vadd.f32 %v2079, %v2151
      %v2199 = vadd.f32 %v2080, %v2153
      %v2200 = vadd.f32 %v2081, %v2155
      %v2201 = vadd.f32 %v2082, %v2157
      %v2202 = vadd.f32 %v2083, %v2159
      %v2203 = vadd.f32 %v2084, %v2161
      %v2204 = vadd.f32 %v2085, %v2163
      %v2205 = vadd.f32 %v2086, %v2165
      %v2206 = vadd.f32 %v2087, %v2167
      %v2207 = vadd.f32 %v2088, %v2169
      %v2208 = vadd.f32 %v2089, %v2171
      %v2209 = vadd.f32 %v2090, %v2173
      %v2210 = vadd.f32 %v2091, %v2175
      %v2211 = vadd.f32 %v2092, %v2177
      %v2212 = vadd.f32 %v2093, %v2179
      %v2213 = vadd.f32 %v2094, %v2181
      %v2214 = vpack.c.bf16 %v2199, %v2198
      %v2215 = vpack.c.bf16 %v2201, %v2200
      %v2216 = vpack.c.bf16 %v2203, %v2202
      %v2217 = vpack.c.bf16 %v2205, %v2204
      %v2218 = vpack.c.bf16 %v2207, %v2206
      %v2219 = vpack.c.bf16 %v2209, %v2208
      %v2220 = vpack.c.bf16 %v2211, %v2210
      %v2221 = vpack.c.bf16 %v2213, %v2212
      %v2222 = vld [vmem:[%s4] sm:$0x3]
      %v2223 = vld [vmem:[%s5] sm:$0x1]
      %v2225 = vlaneseq
      %v2226 = vshrl.u32 %v2225, 7
      %v2227 = vsub.s32 0, %v2226
      %v2228 = vrot.slane %v2223, %v2227
      %2238 = vrot.lane.b32.xlu0 %v2214, 112
      %v2239 = vpop.permute.xlu0 %2238
      %2240 = vrot.lane.b32.xlu0 %v2215, 112
      %v2241 = vpop.permute.xlu0 %2240
      %2242 = vrot.lane.b32.xlu0 %v2216, 112
      %v2243 = vpop.permute.xlu0 %2242
      %2244 = vrot.lane.b32.xlu0 %v2217, 112
      %v2245 = vpop.permute.xlu0 %2244
      %2246 = vrot.lane.b32.xlu0 %v2218, 112
      %v2247 = vpop.permute.xlu0 %2246
      %2248 = vrot.lane.b32.xlu0 %v2219, 112
      %v2249 = vpop.permute.xlu0 %2248
      %2250 = vrot.lane.b32.xlu0 %v2220, 112
      %v2251 = vpop.permute.xlu0 %2250
      %2252 = vrot.lane.b32.xlu0 %v2221, 112
      %v2253 = vpop.permute.xlu0 %2252
      %v2255 = vsel %vm433, %v2239, 0
      %v2258 = vsel %vm433, %v2241, 0
      %v2261 = vsel %vm433, %v2243, 0
      %v2264 = vsel %vm433, %v2245, 0
      %v2267 = vsel %vm433, %v2247, 0
      %v2270 = vsel %vm433, %v2249, 0
      %v2273 = vsel %vm433, %v2251, 0
      %v2276 = vsel %vm433, %v2253, 0
      %v2279 = vsel %vm464, %v2222, 0
      %2281 = vmatprep.subr.bf16.mxu0 0
      %2282 = vmatpush1.bf16.msra.mxu0 %v2279
      %2283 = vmatprep.subr.bf16.mxu0 0
      %2284 = vmatpush1.bf16.msra.mxu0 0
      %2285 = vmatprep.subr.bf16.mxu0 0
      %2286 = vmatpush1.bf16.msra.mxu0 0
      %2287 = vmatprep.subr.bf16.mxu0 0
      %2288 = vmatpush1.bf16.msra.mxu0 0
      %2289 = vmatprep.subr.bf16.mxu0 0
      %2290 = vmatpush1.bf16.msra.mxu0 0
      %2291 = vmatprep.subr.bf16.mxu0 0
      %2292 = vmatpush1.bf16.msra.mxu0 0
      %2293 = vmatprep.subr.bf16.mxu0 0
      %2294 = vmatpush1.bf16.msra.mxu0 0
      %2295 = vmatprep.subr.bf16.mxu0 0
      %2296 = vmatpush1.bf16.msra.mxu0 0
      %2297 = vmatprep.subr.bf16.mxu0 0
      %2298 = vmatpush1.bf16.msra.mxu0 0
      %2299 = vmatprep.subr.bf16.mxu0 0
      %2300 = vmatpush1.bf16.msra.mxu0 0
      %2301 = vmatprep.subr.bf16.mxu0 0
      %2302 = vmatpush1.bf16.msra.mxu0 0
      %2303 = vmatprep.subr.bf16.mxu0 0
      %2304 = vmatpush1.bf16.msra.mxu0 0
      %2305 = vmatprep.subr.bf16.mxu0 0
      %2306 = vmatpush1.bf16.msra.mxu0 0
      %2307 = vmatprep.subr.bf16.mxu0 0
      %2308 = vmatpush1.bf16.msra.mxu0 0
      %2309 = vmatprep.subr.bf16.mxu0 0
      %2310 = vmatpush1.bf16.msra.mxu0 0
      %2311 = vmatprep.subr.bf16.mxu0 0
      %2312 = vmatpush1.bf16.msra.mxu0 0
      %2313 = vmatprep.mubr.bf16.mxu0 0
      %2314 = vmatmul.mubr.bf16.gmra.mrb[0].mxu0 %v2255
      %v2315 = vpop.f32.mrb[0].mxu0
      %v2316 = vadd.f32 %v2228, %v2315
      %v2317 = vpop.f32.mrb[0].mxu0
      %v2318 = vpop.f32.mrb[0].mxu0
      %v2319 = vadd.f32 %v2228, %v2318
      %v2320 = vpop.f32.mrb[0].mxu0
      %2321 = vmatprep.mubr.bf16.mxu0 0
      %2322 = vmatmul.mubr.bf16.gmra.mrb[0].mxu0 %v2258
      %v2323 = vpop.f32.mrb[0].mxu0
      %v2324 = vadd.f32 %v2228, %v2323
      %v2325 = vpop.f32.mrb[0].mxu0
      %v2326 = vpop.f32.mrb[0].mxu0
      %v2327 = vadd.f32 %v2228, %v2326
      %v2328 = vpop.f32.mrb[0].mxu0
      %2329 = vmatprep.mubr.bf16.mxu0 0
      %2330 = vmatmul.mubr.bf16.gmra.mrb[0].mxu0 %v2261
      %v2331 = vpop.f32.mrb[0].mxu0
      %v2332 = vadd.f32 %v2228, %v2331
      %v2333 = vpop.f32.mrb[0].mxu0
      %v2334 = vpop.f32.mrb[0].mxu0
      %v2335 = vadd.f32 %v2228, %v2334
      %v2336 = vpop.f32.mrb[0].mxu0
      %2337 = vmatprep.mubr.bf16.mxu0 0
      %2338 = vmatmul.mubr.bf16.gmra.mrb[0].mxu0 %v2264
      %v2339 = vpop.f32.mrb[0].mxu0
      %v2340 = vadd.f32 %v2228, %v2339
      %v2341 = vpop.f32.mrb[0].mxu0
      %v2342 = vpop.f32.mrb[0].mxu0
      %v2343 = vadd.f32 %v2228, %v2342
      %v2344 = vpop.f32.mrb[0].mxu0
      %2345 = vmatprep.mubr.bf16.mxu0 0
      %2346 = vmatmul.mubr.bf16.gmra.mrb[0].mxu0 %v2267
      %v2347 = vpop.f32.mrb[0].mxu0
      %v2348 = vadd.f32 %v2228, %v2347
      %v2349 = vpop.f32.mrb[0].mxu0
      %v2350 = vpop.f32.mrb[0].mxu0
      %v2351 = vadd.f32 %v2228, %v2350
      %v2352 = vpop.f32.mrb[0].mxu0
      %2353 = vmatprep.mubr.bf16.mxu0 0
      %2354 = vmatmul.mubr.bf16.gmra.mrb[0].mxu0 %v2270
      %v2355 = vpop.f32.mrb[0].mxu0
      %v2356 = vadd.f32 %v2228, %v2355
      %v2357 = vpop.f32.mrb[0].mxu0
      %v2358 = vpop.f32.mrb[0].mxu0
      %v2359 = vadd.f32 %v2228, %v2358
      %v2360 = vpop.f32.mrb[0].mxu0
      %2361 = vmatprep.mubr.bf16.mxu0 0
      %2362 = vmatmul.mubr.bf16.gmra.mrb[0].mxu0 %v2273
      %v2363 = vpop.f32.mrb[0].mxu0
      %v2364 = vadd.f32 %v2228, %v2363
      %v2365 = vpop.f32.mrb[0].mxu0
      %v2366 = vpop.f32.mrb[0].mxu0
      %v2367 = vadd.f32 %v2228, %v2366
      %v2368 = vpop.f32.mrb[0].mxu0
      %2369 = vmatprep.mubr.bf16.mxu0 0
      %2370 = vmatmul.mubr.bf16.gmra.mrb[0].mxu0 %v2276
      %v2371 = vpop.f32.mrb[0].mxu0
      %v2372 = vadd.f32 %v2228, %v2371
      %v2373 = vpop.f32.mrb[0].mxu0
      %v2374 = vpop.f32.mrb[0].mxu0
      %v2375 = vadd.f32 %v2228, %v2374
      %v2376 = vpop.f32.mrb[0].mxu0
      %2377 = vdwg.mxu0
      %v2378 = vmax.f32 %v2316, 0.0
      %v2379 = vmax.f32 %v2319, 0.0
      %v2380 = vmax.f32 %v2324, 0.0
      %v2381 = vmax.f32 %v2327, 0.0
      %v2382 = vmax.f32 %v2332, 0.0
      %v2383 = vmax.f32 %v2335, 0.0
      %v2384 = vmax.f32 %v2340, 0.0
      %v2385 = vmax.f32 %v2343, 0.0
      %v2386 = vmax.f32 %v2348, 0.0
      %v2387 = vmax.f32 %v2351, 0.0
      %v2388 = vmax.f32 %v2356, 0.0
      %v2389 = vmax.f32 %v2359, 0.0
      %v2390 = vmax.f32 %v2364, 0.0
      %v2391 = vmax.f32 %v2367, 0.0
      %v2392 = vmax.f32 %v2372, 0.0
      %v2393 = vmax.f32 %v2375, 0.0
      %v2394 = vpack.c.bf16 %v2379, %v2378
      %v2395 = vpack.c.bf16 %v2381, %v2380
      %v2396 = vpack.c.bf16 %v2383, %v2382
      %v2397 = vpack.c.bf16 %v2385, %v2384
      %v2398 = vpack.c.bf16 %v2387, %v2386
      %v2399 = vpack.c.bf16 %v2389, %v2388
      %v2400 = vpack.c.bf16 %v2391, %v2390
      %v2401 = vpack.c.bf16 %v2393, %v2392
      %v2402 = vld [vmem:[%s6] sm:$0x3]
      %v2403 = vld [vmem:[%s7] sm:$0x1]
      %v2405 = vlaneseq
      %v2406 = vshrl.u32 %v2405, 7
      %v2407 = vsub.s32 0, %v2406
      %v2408 = vrot.slane %v2403, %v2407
      %v2411 = vsel %vm433, %v2394, 0
      %v2414 = vsel %vm433, %v2395, 0
      %v2417 = vsel %vm433, %v2396, 0
      %v2420 = vsel %vm433, %v2397, 0
      %v2423 = vsel %vm433, %v2398, 0
      %v2426 = vsel %vm433, %v2399, 0
      %v2429 = vsel %vm433, %v2400, 0
      %v2432 = vsel %vm433, %v2401, 0
      %v2435 = vsel %vm464, %v2402, 0
      %2437 = vmatprep.subr.bf16.mxu0 0
      %2438 = vmatpush1.bf16.msra.mxu0 %v2435
      %2439 = vmatprep.subr.bf16.mxu0 0
      %2440 = vmatpush1.bf16.msra.mxu0 0
      %2441 = vmatprep.subr.bf16.mxu0 0
      %2442 = vmatpush1.bf16.msra.mxu0 0
      %2443 = vmatprep.subr.bf16.mxu0 0
      %2444 = vmatpush1.bf16.msra.mxu0 0
      %2445 = vmatprep.subr.bf16.mxu0 0
      %2446 = vmatpush1.bf16.msra.mxu0 0
      %2447 = vmatprep.subr.bf16.mxu0 0
      %2448 = vmatpush1.bf16.msra.mxu0 0
      %2449 = vmatprep.subr.bf16.mxu0 0
      %2450 = vmatpush1.bf16.msra.mxu0 0
      %2451 = vmatprep.subr.bf16.mxu0 0
      %2452 = vmatpush1.bf16.msra.mxu0 0
      %2453 = vmatprep.subr.bf16.mxu0 0
      %2454 = vmatpush1.bf16.msra.mxu0 0
      %2455 = vmatprep.subr.bf16.mxu0 0
      %2456 = vmatpush1.bf16.msra.mxu0 0
      %2457 = vmatprep.subr.bf16.mxu0 0
      %2458 = vmatpush1.bf16.msra.mxu0 0
      %2459 = vmatprep.subr.bf16.mxu0 0
      %2460 = vmatpush1.bf16.msra.mxu0 0
      %2461 = vmatprep.subr.bf16.mxu0 0
      %2462 = vmatpush1.bf16.msra.mxu0 0
      %2463 = vmatprep.subr.bf16.mxu0 0
      %2464 = vmatpush1.bf16.msra.mxu0 0
      %2465 = vmatprep.subr.bf16.mxu0 0
      %2466 = vmatpush1.bf16.msra.mxu0 0
      %2467 = vmatprep.subr.bf16.mxu0 0
      %2468 = vmatpush1.bf16.msra.mxu0 0
      %2469 = vmatprep.mubr.bf16.mxu0 0
      %2470 = vmatmul.mubr.bf16.gmra.mrb[0].mxu0 %v2411
      %v2471 = vpop.f32.mrb[0].mxu0
      %v2472 = vadd.f32 %v2408, %v2471
      %v2473 = vpop.f32.mrb[0].mxu0
      %v2474 = vpop.f32.mrb[0].mxu0
      %v2475 = vadd.f32 %v2408, %v2474
      %v2476 = vpop.f32.mrb[0].mxu0
      %2477 = vmatprep.mubr.bf16.mxu0 0
      %2478 = vmatmul.mubr.bf16.gmra.mrb[0].mxu0 %v2414
      %v2479 = vpop.f32.mrb[0].mxu0
      %v2480 = vadd.f32 %v2408, %v2479
      %v2481 = vpop.f32.mrb[0].mxu0
      %v2482 = vpop.f32.mrb[0].mxu0
      %v2483 = vadd.f32 %v2408, %v2482
      %v2484 = vpop.f32.mrb[0].mxu0
      %2485 = vmatprep.mubr.bf16.mxu0 0
      %2486 = vmatmul.mubr.bf16.gmra.mrb[0].mxu0 %v2417
      %v2487 = vpop.f32.mrb[0].mxu0
      %v2488 = vadd.f32 %v2408, %v2487
      %v2489 = vpop.f32.mrb[0].mxu0
      %v2490 = vpop.f32.mrb[0].mxu0
      %v2491 = vadd.f32 %v2408, %v2490
      %v2492 = vpop.f32.mrb[0].mxu0
      %2493 = vmatprep.mubr.bf16.mxu0 0
      %2494 = vmatmul.mubr.bf16.gmra.mrb[0].mxu0 %v2420
      %v2495 = vpop.f32.mrb[0].mxu0
      %v2496 = vadd.f32 %v2408, %v2495
      %v2497 = vpop.f32.mrb[0].mxu0
      %v2498 = vpop.f32.mrb[0].mxu0
      %v2499 = vadd.f32 %v2408, %v2498
      %v2500 = vpop.f32.mrb[0].mxu0
      %2501 = vmatprep.mubr.bf16.mxu0 0
      %2502 = vmatmul.mubr.bf16.gmra.mrb[0].mxu0 %v2423
      %v2503 = vpop.f32.mrb[0].mxu0
      %v2504 = vadd.f32 %v2408, %v2503
      %v2505 = vpop.f32.mrb[0].mxu0
      %v2506 = vpop.f32.mrb[0].mxu0
      %v2507 = vadd.f32 %v2408, %v2506
      %v2508 = vpop.f32.mrb[0].mxu0
      %2509 = vmatprep.mubr.bf16.mxu0 0
      %2510 = vmatmul.mubr.bf16.gmra.mrb[0].mxu0 %v2426
      %v2511 = vpop.f32.mrb[0].mxu0
      %v2512 = vadd.f32 %v2408, %v2511
      %v2513 = vpop.f32.mrb[0].mxu0
      %v2514 = vpop.f32.mrb[0].mxu0
      %v2515 = vadd.f32 %v2408, %v2514
      %v2516 = vpop.f32.mrb[0].mxu0
      %2517 = vmatprep.mubr.bf16.mxu0 0
      %2518 = vmatmul.mubr.bf16.gmra.mrb[0].mxu0 %v2429
      %v2519 = vpop.f32.mrb[0].mxu0
      %v2520 = vadd.f32 %v2408, %v2519
      %v2521 = vpop.f32.mrb[0].mxu0
      %v2522 = vpop.f32.mrb[0].mxu0
      %v2523 = vadd.f32 %v2408, %v2522
      %v2524 = vpop.f32.mrb[0].mxu0
      %2525 = vmatprep.mubr.bf16.mxu0 0
      %2526 = vmatmul.mubr.bf16.gmra.mrb[0].mxu0 %v2432
      %v2527 = vpop.f32.mrb[0].mxu0
      %v2528 = vadd.f32 %v2408, %v2527
      %v2529 = vpop.f32.mrb[0].mxu0
      %v2530 = vpop.f32.mrb[0].mxu0
      %v2531 = vadd.f32 %v2408, %v2530
      %v2532 = vpop.f32.mrb[0].mxu0
      %2533 = vdwg.mxu0
      %v2534 = vadd.f32 %v2472, %v588
      %v2535 = vadd.f32 %v2475, %v589
      %v2536 = vadd.f32 %v2480, %v590
      %v2537 = vadd.f32 %v2483, %v591
      %v2538 = vadd.f32 %v2488, %v592
      %v2539 = vadd.f32 %v2491, %v593
      %v2540 = vadd.f32 %v2496, %v594
      %v2541 = vadd.f32 %v2499, %v595
      %v2542 = vadd.f32 %v2504, %v596
      %v2543 = vadd.f32 %v2507, %v597
      %v2544 = vadd.f32 %v2512, %v598
      %v2545 = vadd.f32 %v2515, %v599
      %v2546 = vadd.f32 %v2520, %v600
      %v2547 = vadd.f32 %v2523, %v601
      %v2548 = vadd.f32 %v2528, %v602
      %v2549 = vadd.f32 %v2531, %v603
      %v2550 = vmax.f32 %v2534, 0.0
      %v2551 = vmax.f32 %v2535, 0.0
      %v2552 = vmax.f32 %v2536, 0.0
      %v2553 = vmax.f32 %v2537, 0.0
      %v2554 = vmax.f32 %v2538, 0.0
      %v2555 = vmax.f32 %v2539, 0.0
      %v2556 = vmax.f32 %v2540, 0.0
      %v2557 = vmax.f32 %v2541, 0.0
      %v2558 = vmax.f32 %v2542, 0.0
      %v2559 = vmax.f32 %v2543, 0.0
      %v2560 = vmax.f32 %v2544, 0.0
      %v2561 = vmax.f32 %v2545, 0.0
      %v2562 = vmax.f32 %v2546, 0.0
      %v2563 = vmax.f32 %v2547, 0.0
      %v2564 = vmax.f32 %v2548, 0.0
      %v2565 = vmax.f32 %v2549, 0.0
      %vm2566 = vcmask 130048
      %2567 = vst.msk [vmem:[%s354] sm:$0xff] %vm2566, %v2550
      %2568 = vst.msk [vmem:[%s354 + $0x8] sm:$0xff] %vm2566, %v2551
      %2569 = vst.msk [vmem:[%s354 + $0x10] sm:$0xff] %vm2566, %v2552
      %2570 = vst.msk [vmem:[%s354 + $0x18] sm:$0xff] %vm2566, %v2553
      %2571 = vst.msk [vmem:[%s354 + $0x20] sm:$0xff] %vm2566, %v2554
      %2572 = vst.msk [vmem:[%s354 + $0x28] sm:$0xff] %vm2566, %v2555
      %2573 = vst.msk [vmem:[%s354 + $0x30] sm:$0xff] %vm2566, %v2556
      %2574 = vst.msk [vmem:[%s354 + $0x38] sm:$0xff] %vm2566, %v2557
      %2575 = vst.msk [vmem:[%s354 + $0x40] sm:$0xff] %vm2566, %v2558
      %2576 = vst.msk [vmem:[%s354 + $0x48] sm:$0xff] %vm2566, %v2559
      %2577 = vst.msk [vmem:[%s354 + $0x50] sm:$0xff] %vm2566, %v2560
      %2578 = vst.msk [vmem:[%s354 + $0x58] sm:$0xff] %vm2566, %v2561
      %2579 = vst.msk [vmem:[%s354 + $0x60] sm:$0xff] %vm2566, %v2562
      %2580 = vst.msk [vmem:[%s354 + $0x68] sm:$0xff] %vm2566, %v2563
      %2581 = vst.msk [vmem:[%s354 + $0x70] sm:$0xff] %vm2566, %v2564
      %2582 = vst.msk [vmem:[%s354 + $0x78] sm:$0xff] %vm2566, %v2565
      %s2583 = smul.u32 16, %s25
      %p2584 = scmp.lt.s32.totalorder %s24, 1
      %s2585 = scalar_select %p2584, %s24, 1
      %p2586 = scmp.lt.s32.totalorder %s2583, 31
      %s2587 = scalar_select %p2586, %s2583, 31
      %s2588 = smul.addr %s2585, 32
      %s2589 = sadd.s32 %s2587, %s2588
      %s2590 = smul.addr %s2589, 8
      %s2591 = scalar_lea.vmem %s9, %s2590
      // Predicated region
      $region57: #{tpu_custom_call.1} parent=55 // pred_check
        %p2592 = pneg %p246
      $region58: #{tpu_custom_call.1} parent=55 // pred_check_branch
        %2594 = sbr.rel (%p2592) target = $region60
      $region59: #{tpu_custom_call.1} parent=55 // pred_region
        %s2595 = smul.u32 16, %s25
      $region60: #{tpu_custom_call.1} parent=55 // pred_fallthru
        _
    $region56: #{tpu_custom_call.1} parent=5 // pred_fallthru
      _
    %p2596 = scmp.le.s32.totalorder 2, %s15
    // Predicated region
    $region61: #{tpu_custom_call.1} parent=5 // pred_check
      %p2597 = pneg %p2596
    $region62: #{tpu_custom_call.1} parent=5 // pred_check_branch
      %2599 = sbr.rel (%p2597) target = $region64
    $region63: #{tpu_custom_call.1} parent=5 // pred_region
      %s2600 = ssub.s32 %s15, 2
      // Predicated region
      $region65: #{tpu_custom_call.1} parent=63 // pred_check
        %p2601 = pneg %p252
      $region66: #{tpu_custom_call.1} parent=63 // pred_check_branch
        %2603 = sbr.rel (%p2601) target = $region68
      $region67: #{tpu_custom_call.1} parent=63 // pred_region
        %s2604 = smul.u32 16, %s27
        %p2605 = scmp.lt.s32.totalorder %s26, 1
        %s2606 = scalar_select %p2605, %s26, 1
        %p2607 = scmp.lt.s32.totalorder %s2604, 31
        %s2608 = scalar_select %p2607, %s2604, 31
        %s2609 = smul.addr %s2606, 32
        %s2610 = sadd.s32 %s2608, %s2609
        %s2611 = smul.addr %s2610, 8
        %s2612 = scalar_lea.vmem %s9, %s2611
      $region68: #{tpu_custom_call.1} parent=63 // pred_fallthru
        _
    $region64: #{tpu_custom_call.1} parent=5 // pred_fallthru
      _
  $region6: #{tpu_custom_call.1} parent=0 // loop_footer
    %s19 = sadd.s32 1, %s15
  $region7: #{tpu_custom_call.1} parent=0 // loop_footer_branch
    %14 = sbr.rel target = $region3
  $region8: #{tpu_custom_call.1} parent=0 // loop_exit
    _

</llo_original>
